<compile_context>
chip_gen: v6e
topology: v6e:2x2x1
jax: 0.10.0
libtpu: 0.0.40
codegen_flags: <defaults>
</compile_context>

<pallas_src>
import math

import numpy as np
import jax
import jax.numpy as jnp
from jax import lax
from jax.experimental import pallas as pl
from jax.experimental.pallas import tpu as pltpu

# ---- model config (small, consistent with the PyTorch module) ----
B = 2                 # batch
T = 8                 # sequence length (== block_size)
C = 32                # n_embd
N_HEAD = 4
HEAD_DIM = C // N_HEAD
BT = B * T
LN_EPS = 1e-5
GELU_K = math.sqrt(2.0 / math.pi)
NEG_BIG = -1e9        # finite "-inf" (avoids inf-inf NaN hazards)
ATTN_SCALE = 1.0 / math.sqrt(HEAD_DIM)

# param-slab row layout (f32, (P_ROWS, 128))
ROW_LN1_G, ROW_LN1_B = 0, 1
ROW_B_QKV, ROW_B_PROJ = 2, 3
ROW_LN2_G, ROW_LN2_B = 4, 5
ROW_B_FC, ROW_B_FC2 = 6, 7
ROW_MASK = 8                    # BT rows: additive block-diag + causal mask
ROW_WPROJ = ROW_MASK + BT       # C rows: w_proj (f32, cols 0:C), 8-row aligned
P_ROWS = ROW_WPROJ + C          # 8 + 16 + 32 = 56  (multiple of 8 sublanes)


def _layernorm(x, gamma, beta):
    mu = jnp.mean(x, axis=-1, keepdims=True)
    var = jnp.mean((x - mu) ** 2, axis=-1, keepdims=True)
    return (x - mu) * lax.rsqrt(var + LN_EPS) * gamma + beta


def _new_gelu(x):
    return 0.5 * x * (1.0 + jnp.tanh(GELU_K * (x + 0.044715 * x * x * x)))


def block_kernel(x_ref, w_ref, w_fc2_ref, p_ref, o_ref):
    """Full transformer block, one grid-less invocation.

    x_ref    : (B*T, C) f32     activations, batch folded into rows
    w_ref    : (C, 256) bf16    lane-tile-aligned: [w_qkv*scale pad96->128 | w_fc 128]
    w_fc2_ref: (4*C, C) bf16    second MLP weight
    p_ref    : (P_ROWS, 128) f32 LN params, biases, additive mask, w_proj
    o_ref    : (B*T, C)
    """
    x = x_ref[...].astype(jnp.float32)                        # (BT, C)

    w = w_ref[...]                                            # (C, 256) bf16
    w_qkv = w[:, 0:128]                                       # whole-lane-tile view
    w_fc = w[:, 128:256]                                      # whole-lane-tile view
    w_fc2 = w_fc2_ref[...]                                    # (4C, C) bf16

    p = p_ref[...]                                            # (P_ROWS, 128) f32
    ln1_g = p[ROW_LN1_G:ROW_LN1_G + 1, 0:C]
    ln1_b = p[ROW_LN1_B:ROW_LN1_B + 1, 0:C]
    b_qkv = p[ROW_B_QKV:ROW_B_QKV + 1, :]                     # full 128 row, tail zeros
    b_proj = p[ROW_B_PROJ:ROW_B_PROJ + 1, 0:C]
    ln2_g = p[ROW_LN2_G:ROW_LN2_G + 1, 0:C]
    ln2_b = p[ROW_LN2_B:ROW_LN2_B + 1, 0:C]
    b_fc = p[ROW_B_FC:ROW_B_FC + 1, :]                        # 4C == 128 exactly
    b_fc2 = p[ROW_B_FC2:ROW_B_FC2 + 1, 0:C]
    mask_b = p[ROW_MASK:ROW_MASK + BT, 0:BT]                  # additive mask (0 / -1e9)
    w_proj = p[ROW_WPROJ:ROW_WPROJ + C, :]                    # (C, 128) f32, cols>=C zero

    # ---- ln_1 + causal self-attention ----
    h = _layernorm(x, ln1_g, ln1_b)
    qkv = jnp.dot(h.astype(jnp.bfloat16), w_qkv,
                  preferred_element_type=jnp.float32) + b_qkv  # (BT, 128); cols>=3C stay 0

    y_acc = jnp.zeros((BT, 128), jnp.float32)
    for hh in range(N_HEAD):                                   # static, N_HEAD = 4
        lo = hh * HEAD_DIM
        q_h = qkv[:, lo:lo + HEAD_DIM]                         # (BT, hd), scale pre-folded
        k_h = qkv[:, C + lo:C + lo + HEAD_DIM]
        v_h = qkv[:, 2 * C + lo:2 * C + lo + HEAD_DIM]
        # q @ k^T via transposed-RHS contraction (no explicit transpose), bf16 on MXU
        s = lax.dot_general(q_h.astype(jnp.bfloat16), k_h.astype(jnp.bfloat16),
                            (((1,), (1,)), ((), ())),
                            preferred_element_type=jnp.float32)          # (BT, BT)
        s = s + mask_b
        s = s - jnp.max(s, axis=-1, keepdims=True)
        e = jnp.exp(s)
        att = e * pl.reciprocal(jnp.sum(e, axis=-1, keepdims=True))      # exact (f32)
        head_out = jnp.dot(att.astype(jnp.bfloat16), v_h.astype(jnp.bfloat16),
                           preferred_element_type=jnp.float32)           # (BT, hd)
        # accumulate projection per head: no concat / lane-interleave relayout.
        # w_proj rows lo:lo+8 are 8-sublane-aligned f32 slices of the param slab.
        y_acc = y_acc + jnp.dot(head_out, w_proj[lo:lo + HEAD_DIM, :],
                                preferred_element_type=jnp.float32)      # (BT, 128)
    x1 = x + y_acc[:, 0:C] + b_proj                            # residual 1

    # ---- ln_2 + MLP ----
    h2 = _layernorm(x1, ln2_g, ln2_b)
    m = jnp.dot(h2.astype(jnp.bfloat16), w_fc,
                preferred_element_type=jnp.float32) + b_fc     # (BT, 4C)
    m = _new_gelu(m)
    out = jnp.dot(m.astype(jnp.bfloat16), w_fc2,
                  preferred_element_type=jnp.float32) + b_fc2  # (BT, C)
    o_ref[...] = (x1 + out).astype(o_ref.dtype)                # residual 2


def pack_params(params):
    """One-time parameter packing (runs OUTSIDE the jitted hot path)."""
    # fold 1/sqrt(head_dim) into the Q columns / Q bias
    w_qkv = np.array(params['w_qkv'], dtype=np.float32)
    w_qkv[:, :C] *= ATTN_SCALE
    b_qkv = np.array(params['b_qkv'], dtype=np.float32)
    b_qkv[:C] *= ATTN_SCALE

    # weight slab: two 128-lane tiles [qkv (96->128 zero pad) | fc (128)], bf16
    w_slab = np.zeros((C, 256), np.float32)
    w_slab[:, 0:3 * C] = w_qkv
    w_slab[:, 128:256] = np.asarray(params['w_fc'], np.float32)

    # param slab: LN params, biases, additive mask, w_proj (all f32)
    p_slab = np.zeros((P_ROWS, 128), np.float32)
    p_slab[ROW_LN1_G, 0:C] = np.asarray(params['ln1_g'])
    p_slab[ROW_LN1_B, 0:C] = np.asarray(params['ln1_b'])
    p_slab[ROW_B_QKV, 0:3 * C] = b_qkv
    p_slab[ROW_B_PROJ, 0:C] = np.asarray(params['b_proj'])
    p_slab[ROW_LN2_G, 0:C] = np.asarray(params['ln2_g'])
    p_slab[ROW_LN2_B, 0:C] = np.asarray(params['ln2_b'])
    p_slab[ROW_B_FC, 0:4 * C] = np.asarray(params['b_fc'])
    p_slab[ROW_B_FC2, 0:C] = np.asarray(params['b_fc2'])
    # block-diagonal (same sequence) + causal additive mask over folded (B*T) rows
    r = np.arange(BT)
    allowed = ((r[:, None] // T) == (r[None, :] // T)) & (r[:, None] >= r[None, :])
    p_slab[ROW_MASK:ROW_MASK + BT, 0:BT] = np.where(allowed, 0.0, NEG_BIG)
    p_slab[ROW_WPROJ:ROW_WPROJ + C, 0:C] = np.asarray(params['w_proj'], np.float32)

    return (jnp.asarray(w_slab, jnp.bfloat16),
            jnp.asarray(params['w_fc2'], jnp.bfloat16),
            jnp.asarray(p_slab, jnp.float32))


@jax.jit
def transformer_block(x, w_slab, w_fc2, p_slab):
    """x: (B, T, C) float32; slabs pre-packed by pack_params()."""
    x2d = x.reshape(BT, C)
    vmem = pl.BlockSpec(memory_space=pltpu.MemorySpace.VMEM)
    out2d = pl.pallas_call(
        block_kernel,
        out_shape=jax.ShapeDtypeStruct((BT, C), x.dtype),
        in_specs=[vmem, vmem, vmem, vmem],
        out_specs=vmem,
    )(x2d, w_slab, w_fc2, p_slab)
    # TODO(synk): at realistic B*T, add a row-tile grid (dimension_semantics=("parallel",))
    # so both v7x TensorCores participate; unnecessary at BT=16.
    return out2d.reshape(B, T, C)


def reference_block(x, p):
    """Pure-JAX reference mirroring the PyTorch forward (eval mode)."""
    def ln(z, g, b):
        mu = jnp.mean(z, axis=-1, keepdims=True)
        var = jnp.mean((z - mu) ** 2, axis=-1, keepdims=True)
        return (z - mu) * lax.rsqrt(var + LN_EPS) * g + b

    h = ln(x, p['ln1_g'], p['ln1_b'])
    qkv = h @ p['w_qkv'] + p['b_qkv']
    q, k, v = jnp.split(qkv, 3, axis=-1)

    def heads(z):
        return z.reshape(B, T, N_HEAD, HEAD_DIM).transpose(0, 2, 1, 3)

    q, k, v = heads(q), heads(k), heads(v)
    att = jnp.einsum('bhtd,bhsd->bhts', q, k) / math.sqrt(HEAD_DIM)
    mask = jnp.tril(jnp.ones((T, T), bool))
    att = jnp.where(mask[None, None], att, -jnp.inf)
    att = jax.nn.softmax(att, axis=-1)
    y = jnp.einsum('bhts,bhsd->bhtd', att, v).transpose(0, 2, 1, 3).reshape(B, T, C)
    y = y @ p['w_proj'] + p['b_proj']
    x1 = x + y
    h2 = ln(x1, p['ln2_g'], p['ln2_b'])
    m = _new_gelu(h2 @ p['w_fc'] + p['b_fc'])
    m = m @ p['w_fc2'] + p['b_fc2']
    return x1 + m


def make_params(key):
    ks = jax.random.split(key, 8)
    s = 0.02
    return {
        'ln1_g': jnp.ones((C,), jnp.float32),
        'ln1_b': jnp.zeros((C,), jnp.float32),
        # PyTorch Linear weight is (out, in); stored pre-transposed as (in, out)
        'w_qkv': s * jax.random.normal(ks[0], (C, 3 * C), jnp.float32),
        'b_qkv': s * jax.random.normal(ks[1], (3 * C,), jnp.float32),
        'w_proj': s * jax.random.normal(ks[2], (C, C), jnp.float32),
        'b_proj': s * jax.random.normal(ks[3], (C,), jnp.float32),
        'ln2_g': jnp.ones((C,), jnp.float32),
        'ln2_b': jnp.zeros((C,), jnp.float32),
        'w_fc': s * jax.random.normal(ks[4], (C, 4 * C), jnp.float32),
        'b_fc': s * jax.random.normal(ks[5], (4 * C,), jnp.float32),
        'w_fc2': s * jax.random.normal(ks[6], (4 * C, C), jnp.float32),
        'b_fc2': s * jax.random.normal(ks[7], (C,), jnp.float32),
    }


if __name__ == "__main__":
    key = jax.random.PRNGKey(0)
    kx, kp = jax.random.split(key)
    x = jax.random.normal(kx, (B, T, C), jnp.float32)
    params = make_params(kp)

    # one-time packing, outside the hot path
    w_slab, w_fc2, p_slab = pack_params(params)

    out = jax.block_until_ready(transformer_block(x, w_slab, w_fc2, p_slab))

    ref = reference_block(x, params)
    assert out.shape == (B, T, C)
    max_err = float(jnp.max(jnp.abs(out - ref)))
    # tolerance accounts for bf16 matmul operands (f32 accumulation / LN / softmax)
    assert jnp.allclose(out, ref, atol=2e-3, rtol=2e-3), max_err
    print("KERNEL_OK")
</pallas_src>

<mosaic_0001>
module attributes {stable_mosaic.version = 11 : i64} {
  func.func @block_kernel(%arg0: memref<16x32xf32, #tpu.memory_space<vmem>>, %arg1: memref<32x256xbf16, #tpu.memory_space<vmem>>, %arg2: memref<128x32xbf16, #tpu.memory_space<vmem>>, %arg3: memref<56x128xf32, #tpu.memory_space<vmem>>, %arg4: memref<16x32xf32, #tpu.memory_space<vmem>>) attributes {dimension_semantics = [], scalar_prefetch = 0 : i64, scratch_operands = 0 : i64, tpu.core_type = #tpu.core_type<tc>} {
    %c0 = arith.constant 0 : index
    %c0_0 = arith.constant 0 : index
    %0 = vector.load %arg0[%c0, %c0_0] : memref<16x32xf32, #tpu.memory_space<vmem>>, vector<16x32xf32>
    %c0_1 = arith.constant 0 : index
    %c0_2 = arith.constant 0 : index
    %1 = vector.load %arg1[%c0_1, %c0_2] : memref<32x256xbf16, #tpu.memory_space<vmem>>, vector<32x256xbf16>
    %2 = vector.extract_strided_slice %1 {offsets = [0, 0], sizes = [32, 128], strides = [1, 1]} : vector<32x256xbf16> to vector<32x128xbf16>
    %3 = vector.extract_strided_slice %1 {offsets = [0, 128], sizes = [32, 128], strides = [1, 1]} : vector<32x256xbf16> to vector<32x128xbf16>
    %c0_3 = arith.constant 0 : index
    %c0_4 = arith.constant 0 : index
    %4 = vector.load %arg2[%c0_3, %c0_4] : memref<128x32xbf16, #tpu.memory_space<vmem>>, vector<128x32xbf16>
    %c0_5 = arith.constant 0 : index
    %c0_6 = arith.constant 0 : index
    %5 = vector.load %arg3[%c0_5, %c0_6] : memref<56x128xf32, #tpu.memory_space<vmem>>, vector<56x128xf32>
    %6 = vector.extract_strided_slice %5 {offsets = [0, 0], sizes = [1, 32], strides = [1, 1]} : vector<56x128xf32> to vector<1x32xf32>
    %7 = vector.extract_strided_slice %5 {offsets = [1, 0], sizes = [1, 32], strides = [1, 1]} : vector<56x128xf32> to vector<1x32xf32>
    %8 = vector.extract_strided_slice %5 {offsets = [2, 0], sizes = [1, 128], strides = [1, 1]} : vector<56x128xf32> to vector<1x128xf32>
    %9 = vector.extract_strided_slice %5 {offsets = [3, 0], sizes = [1, 32], strides = [1, 1]} : vector<56x128xf32> to vector<1x32xf32>
    %10 = vector.extract_strided_slice %5 {offsets = [4, 0], sizes = [1, 32], strides = [1, 1]} : vector<56x128xf32> to vector<1x32xf32>
    %11 = vector.extract_strided_slice %5 {offsets = [5, 0], sizes = [1, 32], strides = [1, 1]} : vector<56x128xf32> to vector<1x32xf32>
    %12 = vector.extract_strided_slice %5 {offsets = [6, 0], sizes = [1, 128], strides = [1, 1]} : vector<56x128xf32> to vector<1x128xf32>
    %13 = vector.extract_strided_slice %5 {offsets = [7, 0], sizes = [1, 32], strides = [1, 1]} : vector<56x128xf32> to vector<1x32xf32>
    %14 = vector.extract_strided_slice %5 {offsets = [8, 0], sizes = [16, 16], strides = [1, 1]} : vector<56x128xf32> to vector<16x16xf32>
    %15 = vector.extract_strided_slice %5 {offsets = [24, 0], sizes = [32, 128], strides = [1, 1]} : vector<56x128xf32> to vector<32x128xf32>
    %cst = arith.constant dense<0.000000e+00> : vector<16xf32>
    %16 = vector.multi_reduction <add>, %0, %cst [1] : vector<16x32xf32> to vector<16xf32>
    %17 = vector.shape_cast %16 : vector<16xf32> to vector<16x1xf32>
    %cst_7 = arith.constant 3.200000e+01 : f32
    %18 = vector.broadcast %cst_7 : f32 to vector<16x1xf32>
    %19 = arith.divf %17, %18 : vector<16x1xf32>
    %20 = vector.broadcast %19 : vector<16x1xf32> to vector<16x32xf32>
    %21 = arith.subf %0, %20 : vector<16x32xf32>
    %22 = arith.mulf %21, %21 : vector<16x32xf32>
    %cst_8 = arith.constant dense<0.000000e+00> : vector<16xf32>
    %23 = vector.multi_reduction <add>, %22, %cst_8 [1] : vector<16x32xf32> to vector<16xf32>
    %24 = vector.shape_cast %23 : vector<16xf32> to vector<16x1xf32>
    %cst_9 = arith.constant 3.200000e+01 : f32
    %25 = vector.broadcast %cst_9 : f32 to vector<16x1xf32>
    %26 = arith.divf %24, %25 : vector<16x1xf32>
    %27 = vector.broadcast %19 : vector<16x1xf32> to vector<16x32xf32>
    %28 = arith.subf %0, %27 : vector<16x32xf32>
    %cst_10 = arith.constant 9.99999974E-6 : f32
    %29 = vector.broadcast %cst_10 : f32 to vector<16x1xf32>
    %30 = arith.addf %26, %29 : vector<16x1xf32>
    %31 = math.rsqrt %30 : vector<16x1xf32>
    %32 = vector.broadcast %31 : vector<16x1xf32> to vector<16x32xf32>
    %33 = arith.mulf %28, %32 : vector<16x32xf32>
    %34 = vector.broadcast %6 : vector<1x32xf32> to vector<16x32xf32>
    %35 = arith.mulf %33, %34 : vector<16x32xf32>
    %36 = vector.broadcast %7 : vector<1x32xf32> to vector<16x32xf32>
    %37 = arith.addf %35, %36 : vector<16x32xf32>
    %38 = arith.truncf %37 : vector<16x32xf32> to vector<16x32xbf16>
    %cst_11 = arith.constant dense<0.000000e+00> : vector<16x128xf32>
    %39 = tpu.matmul %38, %2, %cst_11 {dimension_numbers = #tpu.dot_dimension_numbers<[1], [0], [0], [1], [0, 0, 1, 1], [], []>} : vector<16x32xbf16>, vector<32x128xbf16>, vector<16x128xf32> -> vector<16x128xf32>
    %40 = vector.broadcast %8 : vector<1x128xf32> to vector<16x128xf32>
    %41 = arith.addf %39, %40 : vector<16x128xf32>
    %cst_12 = arith.constant 0.000000e+00 : f32
    %42 = vector.broadcast %cst_12 : f32 to vector<16x128xf32>
    %43 = vector.extract_strided_slice %41 {offsets = [0, 0], sizes = [16, 8], strides = [1, 1]} : vector<16x128xf32> to vector<16x8xf32>
    %44 = vector.extract_strided_slice %41 {offsets = [0, 32], sizes = [16, 8], strides = [1, 1]} : vector<16x128xf32> to vector<16x8xf32>
    %45 = vector.extract_strided_slice %41 {offsets = [0, 64], sizes = [16, 8], strides = [1, 1]} : vector<16x128xf32> to vector<16x8xf32>
    %46 = arith.truncf %43 : vector<16x8xf32> to vector<16x8xbf16>
    %47 = arith.truncf %44 : vector<16x8xf32> to vector<16x8xbf16>
    %cst_13 = arith.constant dense<0.000000e+00> : vector<16x16xf32>
    %48 = tpu.matmul %46, %47, %cst_13 {dimension_numbers = #tpu.dot_dimension_numbers<[1], [1], [0], [0], [0, 0, 1, 0], [], []>} : vector<16x8xbf16>, vector<16x8xbf16>, vector<16x16xf32> -> vector<16x16xf32>
    %49 = arith.addf %48, %14 : vector<16x16xf32>
    %cst_14 = arith.constant dense<0xFF800000> : vector<16xf32>
    %50 = vector.multi_reduction <maximumf>, %49, %cst_14 [1] : vector<16x16xf32> to vector<16xf32>
    %51 = vector.shape_cast %50 : vector<16xf32> to vector<16x1xf32>
    %52 = vector.broadcast %51 : vector<16x1xf32> to vector<16x16xf32>
    %53 = arith.subf %49, %52 : vector<16x16xf32>
    %54 = math.exp %53 : vector<16x16xf32>
    %cst_15 = arith.constant dense<0.000000e+00> : vector<16xf32>
    %55 = vector.multi_reduction <add>, %54, %cst_15 [1] : vector<16x16xf32> to vector<16xf32>
    %56 = vector.shape_cast %55 : vector<16xf32> to vector<16x1xf32>
    %57 = tpu.reciprocal %56 : vector<16x1xf32> -> vector<16x1xf32>
    %58 = vector.broadcast %57 : vector<16x1xf32> to vector<16x16xf32>
    %59 = arith.mulf %54, %58 : vector<16x16xf32>
    %60 = arith.truncf %59 : vector<16x16xf32> to vector<16x16xbf16>
    %61 = arith.truncf %45 : vector<16x8xf32> to vector<16x8xbf16>
    %cst_16 = arith.constant dense<0.000000e+00> : vector<16x8xf32>
    %62 = tpu.matmul %60, %61, %cst_16 {dimension_numbers = #tpu.dot_dimension_numbers<[1], [0], [0], [1], [0, 0, 1, 1], [], []>} : vector<16x16xbf16>, vector<16x8xbf16>, vector<16x8xf32> -> vector<16x8xf32>
    %63 = vector.extract_strided_slice %15 {offsets = [0, 0], sizes = [8, 128], strides = [1, 1]} : vector<32x128xf32> to vector<8x128xf32>
    %cst_17 = arith.constant dense<0.000000e+00> : vector<16x128xf32>
    %64 = tpu.matmul %62, %63, %cst_17 {dimension_numbers = #tpu.dot_dimension_numbers<[1], [0], [0], [1], [0, 0, 1, 1], [], []>} : vector<16x8xf32>, vector<8x128xf32>, vector<16x128xf32> -> vector<16x128xf32>
    %65 = arith.addf %42, %64 : vector<16x128xf32>
    %66 = vector.extract_strided_slice %41 {offsets = [0, 8], sizes = [16, 8], strides = [1, 1]} : vector<16x128xf32> to vector<16x8xf32>
    %67 = vector.extract_strided_slice %41 {offsets = [0, 40], sizes = [16, 8], strides = [1, 1]} : vector<16x128xf32> to vector<16x8xf32>
    %68 = vector.extract_strided_slice %41 {offsets = [0, 72], sizes = [16, 8], strides = [1, 1]} : vector<16x128xf32> to vector<16x8xf32>
    %69 = arith.truncf %66 : vector<16x8xf32> to vector<16x8xbf16>
    %70 = arith.truncf %67 : vector<16x8xf32> to vector<16x8xbf16>
    %cst_18 = arith.constant dense<0.000000e+00> : vector<16x16xf32>
    %71 = tpu.matmul %69, %70, %cst_18 {dimension_numbers = #tpu.dot_dimension_numbers<[1], [1], [0], [0], [0, 0, 1, 0], [], []>} : vector<16x8xbf16>, vector<16x8xbf16>, vector<16x16xf32> -> vector<16x16xf32>
    %72 = arith.addf %71, %14 : vector<16x16xf32>
    %cst_19 = arith.constant dense<0xFF800000> : vector<16xf32>
    %73 = vector.multi_reduction <maximumf>, %72, %cst_19 [1] : vector<16x16xf32> to vector<16xf32>
    %74 = vector.shape_cast %73 : vector<16xf32> to vector<16x1xf32>
    %75 = vector.broadcast %74 : vector<16x1xf32> to vector<16x16xf32>
    %76 = arith.subf %72, %75 : vector<16x16xf32>
    %77 = math.exp %76 : vector<16x16xf32>
    %cst_20 = arith.constant dense<0.000000e+00> : vector<16xf32>
    %78 = vector.multi_reduction <add>, %77, %cst_20 [1] : vector<16x16xf32> to vector<16xf32>
    %79 = vector.shape_cast %78 : vector<16xf32> to vector<16x1xf32>
    %80 = tpu.reciprocal %79 : vector<16x1xf32> -> vector<16x1xf32>
    %81 = vector.broadcast %80 : vector<16x1xf32> to vector<16x16xf32>
    %82 = arith.mulf %77, %81 : vector<16x16xf32>
    %83 = arith.truncf %82 : vector<16x16xf32> to vector<16x16xbf16>
    %84 = arith.truncf %68 : vector<16x8xf32> to vector<16x8xbf16>
    %cst_21 = arith.constant dense<0.000000e+00> : vector<16x8xf32>
    %85 = tpu.matmul %83, %84, %cst_21 {dimension_numbers = #tpu.dot_dimension_numbers<[1], [0], [0], [1], [0, 0, 1, 1], [], []>} : vector<16x16xbf16>, vector<16x8xbf16>, vector<16x8xf32> -> vector<16x8xf32>
    %86 = vector.extract_strided_slice %15 {offsets = [8, 0], sizes = [8, 128], strides = [1, 1]} : vector<32x128xf32> to vector<8x128xf32>
    %cst_22 = arith.constant dense<0.000000e+00> : vector<16x128xf32>
    %87 = tpu.matmul %85, %86, %cst_22 {dimension_numbers = #tpu.dot_dimension_numbers<[1], [0], [0], [1], [0, 0, 1, 1], [], []>} : vector<16x8xf32>, vector<8x128xf32>, vector<16x128xf32> -> vector<16x128xf32>
    %88 = arith.addf %65, %87 : vector<16x128xf32>
    %89 = vector.extract_strided_slice %41 {offsets = [0, 16], sizes = [16, 8], strides = [1, 1]} : vector<16x128xf32> to vector<16x8xf32>
    %90 = vector.extract_strided_slice %41 {offsets = [0, 48], sizes = [16, 8], strides = [1, 1]} : vector<16x128xf32> to vector<16x8xf32>
    %91 = vector.extract_strided_slice %41 {offsets = [0, 80], sizes = [16, 8], strides = [1, 1]} : vector<16x128xf32> to vector<16x8xf32>
    %92 = arith.truncf %89 : vector<16x8xf32> to vector<16x8xbf16>
    %93 = arith.truncf %90 : vector<16x8xf32> to vector<16x8xbf16>
    %cst_23 = arith.constant dense<0.000000e+00> : vector<16x16xf32>
    %94 = tpu.matmul %92, %93, %cst_23 {dimension_numbers = #tpu.dot_dimension_numbers<[1], [1], [0], [0], [0, 0, 1, 0], [], []>} : vector<16x8xbf16>, vector<16x8xbf16>, vector<16x16xf32> -> vector<16x16xf32>
    %95 = arith.addf %94, %14 : vector<16x16xf32>
    %cst_24 = arith.constant dense<0xFF800000> : vector<16xf32>
    %96 = vector.multi_reduction <maximumf>, %95, %cst_24 [1] : vector<16x16xf32> to vector<16xf32>
    %97 = vector.shape_cast %96 : vector<16xf32> to vector<16x1xf32>
    %98 = vector.broadcast %97 : vector<16x1xf32> to vector<16x16xf32>
    %99 = arith.subf %95, %98 : vector<16x16xf32>
    %100 = math.exp %99 : vector<16x16xf32>
    %cst_25 = arith.constant dense<0.000000e+00> : vector<16xf32>
    %101 = vector.multi_reduction <add>, %100, %cst_25 [1] : vector<16x16xf32> to vector<16xf32>
    %102 = vector.shape_cast %101 : vector<16xf32> to vector<16x1xf32>
    %103 = tpu.reciprocal %102 : vector<16x1xf32> -> vector<16x1xf32>
    %104 = vector.broadcast %103 : vector<16x1xf32> to vector<16x16xf32>
    %105 = arith.mulf %100, %104 : vector<16x16xf32>
    %106 = arith.truncf %105 : vector<16x16xf32> to vector<16x16xbf16>
    %107 = arith.truncf %91 : vector<16x8xf32> to vector<16x8xbf16>
    %cst_26 = arith.constant dense<0.000000e+00> : vector<16x8xf32>
    %108 = tpu.matmul %106, %107, %cst_26 {dimension_numbers = #tpu.dot_dimension_numbers<[1], [0], [0], [1], [0, 0, 1, 1], [], []>} : vector<16x16xbf16>, vector<16x8xbf16>, vector<16x8xf32> -> vector<16x8xf32>
    %109 = vector.extract_strided_slice %15 {offsets = [16, 0], sizes = [8, 128], strides = [1, 1]} : vector<32x128xf32> to vector<8x128xf32>
    %cst_27 = arith.constant dense<0.000000e+00> : vector<16x128xf32>
    %110 = tpu.matmul %108, %109, %cst_27 {dimension_numbers = #tpu.dot_dimension_numbers<[1], [0], [0], [1], [0, 0, 1, 1], [], []>} : vector<16x8xf32>, vector<8x128xf32>, vector<16x128xf32> -> vector<16x128xf32>
    %111 = arith.addf %88, %110 : vector<16x128xf32>
    %112 = vector.extract_strided_slice %41 {offsets = [0, 24], sizes = [16, 8], strides = [1, 1]} : vector<16x128xf32> to vector<16x8xf32>
    %113 = vector.extract_strided_slice %41 {offsets = [0, 56], sizes = [16, 8], strides = [1, 1]} : vector<16x128xf32> to vector<16x8xf32>
    %114 = vector.extract_strided_slice %41 {offsets = [0, 88], sizes = [16, 8], strides = [1, 1]} : vector<16x128xf32> to vector<16x8xf32>
    %115 = arith.truncf %112 : vector<16x8xf32> to vector<16x8xbf16>
    %116 = arith.truncf %113 : vector<16x8xf32> to vector<16x8xbf16>
    %cst_28 = arith.constant dense<0.000000e+00> : vector<16x16xf32>
    %117 = tpu.matmul %115, %116, %cst_28 {dimension_numbers = #tpu.dot_dimension_numbers<[1], [1], [0], [0], [0, 0, 1, 0], [], []>} : vector<16x8xbf16>, vector<16x8xbf16>, vector<16x16xf32> -> vector<16x16xf32>
    %118 = arith.addf %117, %14 : vector<16x16xf32>
    %cst_29 = arith.constant dense<0xFF800000> : vector<16xf32>
    %119 = vector.multi_reduction <maximumf>, %118, %cst_29 [1] : vector<16x16xf32> to vector<16xf32>
    %120 = vector.shape_cast %119 : vector<16xf32> to vector<16x1xf32>
    %121 = vector.broadcast %120 : vector<16x1xf32> to vector<16x16xf32>
    %122 = arith.subf %118, %121 : vector<16x16xf32>
    %123 = math.exp %122 : vector<16x16xf32>
    %cst_30 = arith.constant dense<0.000000e+00> : vector<16xf32>
    %124 = vector.multi_reduction <add>, %123, %cst_30 [1] : vector<16x16xf32> to vector<16xf32>
    %125 = vector.shape_cast %124 : vector<16xf32> to vector<16x1xf32>
    %126 = tpu.reciprocal %125 : vector<16x1xf32> -> vector<16x1xf32>
    %127 = vector.broadcast %126 : vector<16x1xf32> to vector<16x16xf32>
    %128 = arith.mulf %123, %127 : vector<16x16xf32>
    %129 = arith.truncf %128 : vector<16x16xf32> to vector<16x16xbf16>
    %130 = arith.truncf %114 : vector<16x8xf32> to vector<16x8xbf16>
    %cst_31 = arith.constant dense<0.000000e+00> : vector<16x8xf32>
    %131 = tpu.matmul %129, %130, %cst_31 {dimension_numbers = #tpu.dot_dimension_numbers<[1], [0], [0], [1], [0, 0, 1, 1], [], []>} : vector<16x16xbf16>, vector<16x8xbf16>, vector<16x8xf32> -> vector<16x8xf32>
    %132 = vector.extract_strided_slice %15 {offsets = [24, 0], sizes = [8, 128], strides = [1, 1]} : vector<32x128xf32> to vector<8x128xf32>
    %cst_32 = arith.constant dense<0.000000e+00> : vector<16x128xf32>
    %133 = tpu.matmul %131, %132, %cst_32 {dimension_numbers = #tpu.dot_dimension_numbers<[1], [0], [0], [1], [0, 0, 1, 1], [], []>} : vector<16x8xf32>, vector<8x128xf32>, vector<16x128xf32> -> vector<16x128xf32>
    %134 = arith.addf %111, %133 : vector<16x128xf32>
    %135 = vector.extract_strided_slice %134 {offsets = [0, 0], sizes = [16, 32], strides = [1, 1]} : vector<16x128xf32> to vector<16x32xf32>
    %136 = arith.addf %0, %135 : vector<16x32xf32>
    %137 = vector.broadcast %9 : vector<1x32xf32> to vector<16x32xf32>
    %138 = arith.addf %136, %137 : vector<16x32xf32>
    %cst_33 = arith.constant dense<0.000000e+00> : vector<16xf32>
    %139 = vector.multi_reduction <add>, %138, %cst_33 [1] : vector<16x32xf32> to vector<16xf32>
    %140 = vector.shape_cast %139 : vector<16xf32> to vector<16x1xf32>
    %cst_34 = arith.constant 3.200000e+01 : f32
    %141 = vector.broadcast %cst_34 : f32 to vector<16x1xf32>
    %142 = arith.divf %140, %141 : vector<16x1xf32>
    %143 = vector.broadcast %142 : vector<16x1xf32> to vector<16x32xf32>
    %144 = arith.subf %138, %143 : vector<16x32xf32>
    %145 = arith.mulf %144, %144 : vector<16x32xf32>
    %cst_35 = arith.constant dense<0.000000e+00> : vector<16xf32>
    %146 = vector.multi_reduction <add>, %145, %cst_35 [1] : vector<16x32xf32> to vector<16xf32>
    %147 = vector.shape_cast %146 : vector<16xf32> to vector<16x1xf32>
    %cst_36 = arith.constant 3.200000e+01 : f32
    %148 = vector.broadcast %cst_36 : f32 to vector<16x1xf32>
    %149 = arith.divf %147, %148 : vector<16x1xf32>
    %150 = vector.broadcast %142 : vector<16x1xf32> to vector<16x32xf32>
    %151 = arith.subf %138, %150 : vector<16x32xf32>
    %cst_37 = arith.constant 9.99999974E-6 : f32
    %152 = vector.broadcast %cst_37 : f32 to vector<16x1xf32>
    %153 = arith.addf %149, %152 : vector<16x1xf32>
    %154 = math.rsqrt %153 : vector<16x1xf32>
    %155 = vector.broadcast %154 : vector<16x1xf32> to vector<16x32xf32>
    %156 = arith.mulf %151, %155 : vector<16x32xf32>
    %157 = vector.broadcast %10 : vector<1x32xf32> to vector<16x32xf32>
    %158 = arith.mulf %156, %157 : vector<16x32xf32>
    %159 = vector.broadcast %11 : vector<1x32xf32> to vector<16x32xf32>
    %160 = arith.addf %158, %159 : vector<16x32xf32>
    %161 = arith.truncf %160 : vector<16x32xf32> to vector<16x32xbf16>
    %cst_38 = arith.constant dense<0.000000e+00> : vector<16x128xf32>
    %162 = tpu.matmul %161, %3, %cst_38 {dimension_numbers = #tpu.dot_dimension_numbers<[1], [0], [0], [1], [0, 0, 1, 1], [], []>} : vector<16x32xbf16>, vector<32x128xbf16>, vector<16x128xf32> -> vector<16x128xf32>
    %163 = vector.broadcast %12 : vector<1x128xf32> to vector<16x128xf32>
    %164 = arith.addf %162, %163 : vector<16x128xf32>
    %cst_39 = arith.constant 5.000000e-01 : f32
    %165 = vector.broadcast %cst_39 : f32 to vector<16x128xf32>
    %166 = arith.mulf %165, %164 : vector<16x128xf32>
    %cst_40 = arith.constant 4.471500e-02 : f32
    %167 = vector.broadcast %cst_40 : f32 to vector<16x128xf32>
    %168 = arith.mulf %167, %164 : vector<16x128xf32>
    %169 = arith.mulf %168, %164 : vector<16x128xf32>
    %170 = arith.mulf %169, %164 : vector<16x128xf32>
    %171 = arith.addf %164, %170 : vector<16x128xf32>
    %cst_41 = arith.constant 0.797884583 : f32
    %172 = vector.broadcast %cst_41 : f32 to vector<16x128xf32>
    %173 = arith.mulf %172, %171 : vector<16x128xf32>
    %174 = math.tanh %173 : vector<16x128xf32>
    %cst_42 = arith.constant 1.000000e+00 : f32
    %175 = vector.broadcast %cst_42 : f32 to vector<16x128xf32>
    %176 = arith.addf %175, %174 : vector<16x128xf32>
    %177 = arith.mulf %166, %176 : vector<16x128xf32>
    %178 = arith.truncf %177 : vector<16x128xf32> to vector<16x128xbf16>
    %cst_43 = arith.constant dense<0.000000e+00> : vector<16x32xf32>
    %179 = tpu.matmul %178, %4, %cst_43 {dimension_numbers = #tpu.dot_dimension_numbers<[1], [0], [0], [1], [0, 0, 1, 1], [], []>} : vector<16x128xbf16>, vector<128x32xbf16>, vector<16x32xf32> -> vector<16x32xf32>
    %180 = vector.broadcast %13 : vector<1x32xf32> to vector<16x32xf32>
    %181 = arith.addf %179, %180 : vector<16x32xf32>
    %182 = arith.addf %138, %181 : vector<16x32xf32>
    %c0_44 = arith.constant 0 : index
    %c0_45 = arith.constant 0 : index
    %183 = vector.load %arg4[%c0_44, %c0_45] : memref<16x32xf32, #tpu.memory_space<vmem>>, vector<16x32xf32>
    tpu.vector_store %arg4[%c0_44, %c0_45], %182 {strides = array<i32>} : memref<16x32xf32, #tpu.memory_space<vmem>>, vector<16x32xf32>,
    return
  }
}

</mosaic_0001>

<llo_original>
// kernel: transformer_block.1
$region0: #{transformer_block.1}
  #allocation0 [shape = 'u32[]', space=smem, size = 0x4, offset = 0x4, fixed_abs, tag = 'smem constant byte address 0x4 - core index']
  #allocation1 [shape = 'u32[144,128]{1,0:T(1,128)}', space=vmem, size = 0x12000, scoped, tag = 'internal scratch']
  %s0 = inlined_call_operand.vmem [shape: f32[16,32], index: 0, kind: input, shape index: {}]
  %s1 = inlined_call_operand.hbm [shape: bf16[32,256], index: 1, kind: input, shape index: {}]
  %s2 = inlined_call_operand.vmem [shape: bf16[128,32], index: 2, kind: input, shape index: {}]
  %s3 = inlined_call_operand.vmem [shape: f32[56,128], index: 3, kind: input, shape index: {}]
  %s4 = inlined_call_operand.hbm [shape: f32[16,32], index: 4, kind: output, shape index: {}]
  %s5 = sld [smem:[#allocation0]]
  $region30: #{transformer_block.1} parent=0
    _
  %s7 = ssub.s32 1, %s5
  %s8 = scalar_select 0, %s7, %s5
  $region1: #{transformer_block.1} parent=0
    #allocation2 [shape = 'u8[16384]{0}', space=vmem, size = 0x4000, scoped, tag = 'input window, operand 1, single buffered']
    #allocation3 [shape = 's32[1]{0}', space=sflag, size = 0x4, scoped, tag = 'scoped memory for transformer_block.1']
    #allocation4 [shape = 's32[1]{0}', space=sflag, size = 0x4, scoped, tag = 'scoped memory for transformer_block.1']
    #allocation5 [shape = 'u8[8192]{0}', space=vmem, size = 0x2000, scoped, tag = 'output window, operand 0, single buffered']
    %9 = vsyncpa [#allocation3], 0
    %10 = vsyncpa [#allocation4], 0
    // Predicated region
    $region2: #{transformer_block.1} parent=1 // pred_check
      _
    $region3: #{transformer_block.1} parent=1 // pred_check_branch
      %12 = sbr.rel (0) target = $region5
    $region4: #{transformer_block.1} parent=1 // pred_region
      _
    $region5: #{transformer_block.1} parent=1 // pred_fallthru
      _
    // Predicated region
    $region6: #{transformer_block.1} parent=1 // pred_check
      _
    $region7: #{transformer_block.1} parent=1 // pred_check_branch
      %14 = sbr.rel (0) target = $region9
    $region8: #{transformer_block.1} parent=1 // pred_region
      %s16 = ssub.s32 512, 512
      %17 = vsyncadd [#allocation3], %s16
      %s18 = sshll.u32 [#allocation2], 4
      %s19 = int_to_ptr.vmem [resolvable:$true] %s18
      %24 = dma.hbm_to_vmem [thread:$0]  %s1, 512, %s19, [#allocation3], 128, 128, 8
    $region9: #{transformer_block.1} parent=1 // pred_fallthru
      _
    // Predicated region
    $region10: #{transformer_block.1} parent=1 // pred_check
      _
    $region11: #{transformer_block.1} parent=1 // pred_check_branch
      %26 = sbr.rel (0) target = $region13
    $region12: #{transformer_block.1} parent=1 // pred_region
      _
    $region13: #{transformer_block.1} parent=1 // pred_fallthru
      _
    // Predicated region
    $region14: #{transformer_block.1} parent=1 // pred_check
      _
    $region15: #{transformer_block.1} parent=1 // pred_check_branch
      %28 = sbr.rel (0) target = $region17
    $region16: #{transformer_block.1} parent=1 // pred_region
      _
    $region17: #{transformer_block.1} parent=1 // pred_fallthru
      _
    // Predicated region
    $region18: #{transformer_block.1} parent=1 // pred_check
      _
    $region19: #{transformer_block.1} parent=1 // pred_check_branch
      %30 = sbr.rel (0) target = $region21
    $region20: #{transformer_block.1} parent=1 // pred_region
      %31 = dma.done [#allocation3], 512
    $region21: #{transformer_block.1} parent=1 // pred_fallthru
      _
    %v33 = vld [vmem:[%s0] sm:$0xff]
    %v34 = vld [vmem:[%s0 + $0x8] sm:$0xff]
    %v35 = vld [vmem:[#allocation2] sm:$0xff]
    %v36 = vld [vmem:[#allocation2 + $0x8] sm:$0xff]
    %v37 = vld [vmem:[#allocation2 + $0x10] sm:$0xff]
    %v38 = vld [vmem:[#allocation2 + $0x18] sm:$0xff]
    %v39 = vld [vmem:[%s2] sm:$0xf]
    %v40 = vld [vmem:[%s2 + $0x4] sm:$0xf]
    %v41 = vld [vmem:[%s2 + $0x8] sm:$0xf]
    %v42 = vld [vmem:[%s2 + $0xc] sm:$0xf]
    %v43 = vld [vmem:[%s2 + $0x10] sm:$0xf]
    %v44 = vld [vmem:[%s2 + $0x14] sm:$0xf]
    %v45 = vld [vmem:[%s2 + $0x18] sm:$0xf]
    %v46 = vld [vmem:[%s2 + $0x1c] sm:$0xf]
    %v47 = vld [vmem:[%s2 + $0x20] sm:$0xf]
    %v48 = vld [vmem:[%s2 + $0x24] sm:$0xf]
    %v49 = vld [vmem:[%s2 + $0x28] sm:$0xf]
    %v50 = vld [vmem:[%s2 + $0x2c] sm:$0xf]
    %v51 = vld [vmem:[%s2 + $0x30] sm:$0xf]
    %v52 = vld [vmem:[%s2 + $0x34] sm:$0xf]
    %v53 = vld [vmem:[%s2 + $0x38] sm:$0xf]
    %v54 = vld [vmem:[%s2 + $0x3c] sm:$0xf]
    %v55 = vld [vmem:[%s3] sm:$0xff]
    %v56 = vld [vmem:[%s3 + $0x8] sm:$0xff]
    %v57 = vld [vmem:[%s3 + $0x10] sm:$0xff]
    %v58 = vld [vmem:[%s3 + $0x18] sm:$0xff]
    %v59 = vld [vmem:[%s3 + $0x20] sm:$0xff]
    %v60 = vld [vmem:[%s3 + $0x28] sm:$0xff]
    %v61 = vld [vmem:[%s3 + $0x30] sm:$0xff]
    %vm62 = vcmask 261120
    %v63 = vsel %vm62, %v33, 0.0
    %64 = vadd.xlane.f32.xlu0 %v63
    %v65 = vpop.xlane.xlu0 %64
    %v66 = vsel %vm62, %v34, 0.0
    %67 = vadd.xlane.f32.xlu0 %v66
    %v68 = vpop.xlane.xlu0 %67
    %v69 = vrcp.pop 32.0
    %v70 = vmul.f32 %v65, %v69
    %v71 = vmul.f32 %v68, %v69
    %v72 = vsub.f32 %v33, %v70
    %v73 = vsub.f32 %v34, %v71
    %v74 = vmul.f32 %v72, %v72
    %v75 = vmul.f32 %v73, %v73
    %v76 = vsel %vm62, %v74, 0.0
    %77 = vadd.xlane.f32.xlu0 %v76
    %v78 = vpop.xlane.xlu0 %77
    %v79 = vsel %vm62, %v75, 0.0
    %80 = vadd.xlane.f32.xlu0 %v79
    %v81 = vpop.xlane.xlu0 %80
    %v82 = vmul.f32 %v78, %v69
    %v83 = vmul.f32 %v81, %v69
    %v84 = vadd.f32 %v82, 1e-05
    %v85 = vadd.f32 %v83, 1e-05
    %v86 = vrsqrt.pop %v84
    %v87 = vrsqrt.pop %v85
    %v88 = vmul.f32 %v72, %v86
    %v89 = vmul.f32 %v73, %v87
    %v90 = vlaneseq
    %v91 = vshrl.u32 %v90, 7
    %v92 = vsub.s32 0, %v91
    %v93 = vrot.slane %v55, %v92
    %v94 = vmul.f32 %v88, %v93
    %v95 = vmul.f32 %v89, %v93
    %v96 = vlaneseq
    %v97 = vshrl.u32 %v96, 7
    %v98 = vsub.s32 1, %v97
    %v99 = vrot.slane %v55, %v98
    %v100 = vadd.f32 %v94, %v99
    %v101 = vadd.f32 %v95, %v99
    %v102 = vpack.c.bf16 %v101, %v100
    %v103 = vlaneseq
    %v104 = vshrl.u32 %v103, 7
    %v105 = vsub.s32 2, %v104
    %v106 = vrot.slane %v55, %v105
    %v111 = vunpack.c.l.b16 %v35
    %v112 = vunpack.c.l.b16 %v36
    %v113 = vunpack.c.l.b16 %v37
    %v114 = vunpack.c.l.b16 %v38
    %v115 = vpack.c.b16 %v112, %v111
    %v116 = vpack.c.b16 %v114, %v113
    %v120 = vsel %vm62, %v102, 0
    %122 = vmatprep.subr.bf16.mxu0 0
    %123 = vmatpush1.bf16.msra.mxu0 0
    %124 = vmatprep.subr.bf16.mxu0 0
    %125 = vmatpush1.bf16.msra.mxu0 0
    %126 = vmatprep.subr.bf16.mxu0 0
    %127 = vmatpush1.bf16.msra.mxu0 0
    %128 = vmatprep.subr.bf16.mxu0 0
    %129 = vmatpush1.bf16.msra.mxu0 0
    %130 = vmatprep.subr.bf16.mxu0 0
    %131 = vmatpush1.bf16.msra.mxu0 0
    %132 = vmatprep.subr.bf16.mxu0 0
    %133 = vmatpush1.bf16.msra.mxu0 0
    %134 = vmatprep.subr.bf16.mxu0 0
    %135 = vmatpush1.bf16.msra.mxu0 %v116
    %136 = vmatprep.subr.bf16.mxu0 0
    %137 = vmatpush1.bf16.msra.mxu0 %v115
    %138 = vmatprep.subr.bf16.mxu0 0
    %139 = vmatpush2.bf16.msra.mxu0 0
    %140 = vmatprep.subr.bf16.mxu0 0
    %141 = vmatpush2.bf16.msra.mxu0 0
    %142 = vmatprep.subr.bf16.mxu0 0
    %143 = vmatpush2.bf16.msra.mxu0 0
    %144 = vmatprep.subr.bf16.mxu0 0
    %145 = vmatpush2.bf16.msra.mxu0 0
    %146 = vmatprep.subr.bf16.mxu0 0
    %147 = vmatpush2.bf16.msra.mxu0 0
    %148 = vmatprep.subr.bf16.mxu0 0
    %149 = vmatpush2.bf16.msra.mxu0 0
    %150 = vmatprep.subr.bf16.mxu0 0
    %151 = vmatpush2.bf16.msra.mxu0 0
    %152 = vmatprep.subr.bf16.mxu0 0
    %153 = vmatpush2.bf16.msra.mxu0 0
    %154 = vmatprep.mubr.bf16.mxu0 0
    %155 = vmatmul.mubr.bf16.gmra.mxu0 %v120
    %v156 = vpop.f32.mrf.mxu0
    %v157 = vadd.f32 %v106, %v156
    %v158 = vpop.f32.mrf.mxu0
    %v159 = vpop.f32.mrf.mxu0
    %v160 = vadd.f32 %v106, %v159
    %v161 = vpop.f32.mrf.mxu0
    %162 = vdwg.mxu0
    %v163 = vpack.c.bf16 %v160, %v157
    %165 = vrot.lane.b32.xlu0 %v163, 96
    %v166 = vpop.permute.xlu0 %165
    %vm167 = vcmask 64512
    %v169 = vsel %vm167, %v163, 0
    %v172 = vsel %vm167, %v166, 0
    %174 = vmatprep.subr.bf16.mxu0 0
    %175 = vmatpush1.bf16.xpose.msra.mxu0 0
    %176 = vmatprep.subr.bf16.mxu0 0
    %177 = vmatpush1.bf16.xpose.msra.mxu0 0
    %178 = vmatprep.subr.bf16.mxu0 0
    %179 = vmatpush1.bf16.xpose.msra.mxu0 0
    %180 = vmatprep.subr.bf16.mxu0 0
    %181 = vmatpush1.bf16.xpose.msra.mxu0 0
    %182 = vmatprep.subr.bf16.mxu0 0
    %183 = vmatpush1.bf16.xpose.msra.mxu0 0
    %184 = vmatprep.subr.bf16.mxu0 0
    %185 = vmatpush1.bf16.xpose.msra.mxu0 0
    %186 = vmatprep.subr.bf16.mxu0 0
    %187 = vmatpush1.bf16.xpose.msra.mxu0 0
    %188 = vmatprep.subr.bf16.mxu0 0
    %189 = vmatpush1.bf16.xpose.msra.mxu0 %v172
    %190 = vmatprep.subr.bf16.mxu0 0
    %191 = vmatpush2.bf16.xpose.msra.mxu0 0
    %192 = vmatprep.subr.bf16.mxu0 0
    %193 = vmatpush2.bf16.xpose.msra.mxu0 0
    %194 = vmatprep.subr.bf16.mxu0 0
    %195 = vmatpush2.bf16.xpose.msra.mxu0 0
    %196 = vmatprep.subr.bf16.mxu0 0
    %197 = vmatpush2.bf16.xpose.msra.mxu0 0
    %198 = vmatprep.subr.bf16.mxu0 0
    %199 = vmatpush2.bf16.xpose.msra.mxu0 0
    %200 = vmatprep.subr.bf16.mxu0 0
    %201 = vmatpush2.bf16.xpose.msra.mxu0 0
    %202 = vmatprep.subr.bf16.mxu0 0
    %203 = vmatpush2.bf16.xpose.msra.mxu0 0
    %204 = vmatprep.subr.bf16.mxu0 0
    %205 = vmatpush2.bf16.xpose.msra.mxu0 0
    %206 = vmatprep.mubr.bf16.mxu0 0
    %207 = vmatmul.mubr.bf16.gmra.mxu0 %v169
    %v208 = vpop.f32.mrf.mxu0
    %v209 = vadd.f32 %v56, %v208
    %v210 = vpop.f32.mrf.mxu0
    %v211 = vpop.f32.mrf.mxu0
    %v212 = vadd.f32 %v57, %v211
    %v213 = vpop.f32.mrf.mxu0
    %214 = vdwg.mxu0
    %vm215 = vcmask 130048
    %v216 = vsel %vm215, %v209, -inf
    %217 = vmax.xlane.f32.xlu0 %v216
    %v218 = vpop.xlane.xlu0 %217
    %v219 = vsel %vm215, %v212, -inf
    %220 = vmax.xlane.f32.xlu0 %v219
    %v221 = vpop.xlane.xlu0 %220
    %v222 = vsub.f32 %v209, %v218
    %v223 = vsub.f32 %v212, %v221
    %v224 = vmul.f32 %v222, 1.442695
    %v225 = vpow.pop %v224
    %v226 = vmul.f32 %v223, 1.442695
    %v227 = vpow.pop %v226
    %v228 = vsel %vm215, %v225, 0.0
    %229 = vadd.xlane.f32.xlu0 %v228
    %v230 = vpop.xlane.xlu0 %229
    %v231 = vsel %vm215, %v227, 0.0
    %232 = vadd.xlane.f32.xlu0 %v231
    %v233 = vpop.xlane.xlu0 %232
    %v234 = vrcp.pop %v230
    %v235 = vrcp.pop %v233
    %v236 = vmul.f32 %v225, %v234
    %v237 = vmul.f32 %v227, %v235
    %v238 = vpack.c.bf16 %v237, %v236
    %239 = vrot.lane.b32.xlu0 %v163, 64
    %v240 = vpop.permute.xlu0 %239
    %v243 = vsel %vm215, %v238, 0
    %245 = vmatprep.subr.bf16.mxu0 0
    %246 = vmatpush1.bf16.msra.mxu0 0
    %247 = vmatprep.subr.bf16.mxu0 0
    %248 = vmatpush1.bf16.msra.mxu0 0
    %249 = vmatprep.subr.bf16.mxu0 0
    %250 = vmatpush1.bf16.msra.mxu0 0
    %251 = vmatprep.subr.bf16.mxu0 0
    %252 = vmatpush1.bf16.msra.mxu0 0
    %253 = vmatprep.subr.bf16.mxu0 0
    %254 = vmatpush1.bf16.msra.mxu0 0
    %255 = vmatprep.subr.bf16.mxu0 0
    %256 = vmatpush1.bf16.msra.mxu0 0
    %257 = vmatprep.subr.bf16.mxu0 0
    %258 = vmatpush1.bf16.msra.mxu0 0
    %259 = vmatprep.subr.bf16.mxu0 0
    %260 = vmatpush1.bf16.msra.mxu0 %v240
    %261 = vmatprep.subr.bf16.mxu0 0
    %262 = vmatpush2.bf16.msra.mxu0 0
    %263 = vmatprep.subr.bf16.mxu0 0
    %264 = vmatpush2.bf16.msra.mxu0 0
    %265 = vmatprep.subr.bf16.mxu0 0
    %266 = vmatpush2.bf16.msra.mxu0 0
    %267 = vmatprep.subr.bf16.mxu0 0
    %268 = vmatpush2.bf16.msra.mxu0 0
    %269 = vmatprep.subr.bf16.mxu0 0
    %270 = vmatpush2.bf16.msra.mxu0 0
    %271 = vmatprep.subr.bf16.mxu0 0
    %272 = vmatpush2.bf16.msra.mxu0 0
    %273 = vmatprep.subr.bf16.mxu0 0
    %274 = vmatpush2.bf16.msra.mxu0 0
    %275 = vmatprep.subr.bf16.mxu0 0
    %276 = vmatpush2.bf16.msra.mxu0 0
    %277 = vmatprep.mubr.bf16.mxu0 0
    %278 = vmatmul.mubr.bf16.gmra.mxu0 %v243
    %v279 = vpop.f32.mrf.mxu0
    %v280 = vadd.f32 0.0, %v279
    %v281 = vpop.f32.mrf.mxu0
    %v282 = vpop.f32.mrf.mxu0
    %v283 = vadd.f32 0.0, %v282
    %v284 = vpop.f32.mrf.mxu0
    %285 = vdwg.mxu0
    %286 = vrot.lane.b32.xlu0 %v163, 120
    %v287 = vpop.permute.xlu0 %286
    %288 = vrot.lane.b32.xlu0 %v163, 88
    %v289 = vpop.permute.xlu0 %288
    %v291 = vsel %vm167, %v287, 0
    %v294 = vsel %vm167, %v289, 0
    %296 = vmatprep.subr.bf16.mxu0 0
    %297 = vmatpush1.bf16.xpose.msra.mxu0 0
    %298 = vmatprep.subr.bf16.mxu0 0
    %299 = vmatpush1.bf16.xpose.msra.mxu0 0
    %300 = vmatprep.subr.bf16.mxu0 0
    %301 = vmatpush1.bf16.xpose.msra.mxu0 0
    %302 = vmatprep.subr.bf16.mxu0 0
    %303 = vmatpush1.bf16.xpose.msra.mxu0 0
    %304 = vmatprep.subr.bf16.mxu0 0
    %305 = vmatpush1.bf16.xpose.msra.mxu0 0
    %306 = vmatprep.subr.bf16.mxu0 0
    %307 = vmatpush1.bf16.xpose.msra.mxu0 0
    %308 = vmatprep.subr.bf16.mxu0 0
    %309 = vmatpush1.bf16.xpose.msra.mxu0 0
    %310 = vmatprep.subr.bf16.mxu0 0
    %311 = vmatpush1.bf16.xpose.msra.mxu0 %v294
    %312 = vmatprep.subr.bf16.mxu0 0
    %313 = vmatpush2.bf16.xpose.msra.mxu0 0
    %314 = vmatprep.subr.bf16.mxu0 0
    %315 = vmatpush2.bf16.xpose.msra.mxu0 0
    %316 = vmatprep.subr.bf16.mxu0 0
    %317 = vmatpush2.bf16.xpose.msra.mxu0 0
    %318 = vmatprep.subr.bf16.mxu0 0
    %319 = vmatpush2.bf16.xpose.msra.mxu0 0
    %320 = vmatprep.subr.bf16.mxu0 0
    %321 = vmatpush2.bf16.xpose.msra.mxu0 0
    %322 = vmatprep.subr.bf16.mxu0 0
    %323 = vmatpush2.bf16.xpose.msra.mxu0 0
    %324 = vmatprep.subr.bf16.mxu0 0
    %325 = vmatpush2.bf16.xpose.msra.mxu0 0
    %326 = vmatprep.subr.bf16.mxu0 0
    %327 = vmatpush2.bf16.xpose.msra.mxu0 0
    %328 = vmatprep.mubr.bf16.mxu0 0
    %329 = vmatmul.mubr.bf16.gmra.mxu0 %v291
    %v330 = vpop.f32.mrf.mxu0
    %v331 = vadd.f32 %v56, %v330
    %v332 = vpop.f32.mrf.mxu0
    %v333 = vpop.f32.mrf.mxu0
    %v334 = vadd.f32 %v57, %v333
    %v335 = vpop.f32.mrf.mxu0
    %336 = vdwg.mxu0
    %v337 = vsel %vm215, %v331, -inf
    %338 = vmax.xlane.f32.xlu0 %v337
    %v339 = vpop.xlane.xlu0 %338
    %v340 = vsel %vm215, %v334, -inf
    %341 = vmax.xlane.f32.xlu0 %v340
    %v342 = vpop.xlane.xlu0 %341
    %v343 = vsub.f32 %v331, %v339
    %v344 = vsub.f32 %v334, %v342
    %v345 = vmul.f32 %v343, 1.442695
    %v346 = vpow.pop %v345
    %v347 = vmul.f32 %v344, 1.442695
    %v348 = vpow.pop %v347
    %v349 = vsel %vm215, %v346, 0.0
    %350 = vadd.xlane.f32.xlu0 %v349
    %v351 = vpop.xlane.xlu0 %350
    %v352 = vsel %vm215, %v348, 0.0
    %353 = vadd.xlane.f32.xlu0 %v352
    %v354 = vpop.xlane.xlu0 %353
    %v355 = vrcp.pop %v351
    %v356 = vrcp.pop %v354
    %v357 = vmul.f32 %v346, %v355
    %v358 = vmul.f32 %v348, %v356
    %v359 = vpack.c.bf16 %v358, %v357
    %360 = vrot.lane.b32.xlu0 %v163, 56
    %v361 = vpop.permute.xlu0 %360
    %v364 = vsel %vm215, %v359, 0
    %366 = vmatprep.subr.bf16.mxu0 0
    %367 = vmatpush1.bf16.msra.mxu0 0
    %368 = vmatprep.subr.bf16.mxu0 0
    %369 = vmatpush1.bf16.msra.mxu0 0
    %370 = vmatprep.subr.bf16.mxu0 0
    %371 = vmatpush1.bf16.msra.mxu0 0
    %372 = vmatprep.subr.bf16.mxu0 0
    %373 = vmatpush1.bf16.msra.mxu0 0
    %374 = vmatprep.subr.bf16.mxu0 0
    %375 = vmatpush1.bf16.msra.mxu0 0
    %376 = vmatprep.subr.bf16.mxu0 0
    %377 = vmatpush1.bf16.msra.mxu0 0
    %378 = vmatprep.subr.bf16.mxu0 0
    %379 = vmatpush1.bf16.msra.mxu0 0
    %380 = vmatprep.subr.bf16.mxu0 0
    %381 = vmatpush1.bf16.msra.mxu0 %v361
    %382 = vmatprep.subr.bf16.mxu0 0
    %383 = vmatpush2.bf16.msra.mxu0 0
    %384 = vmatprep.subr.bf16.mxu0 0
    %385 = vmatpush2.bf16.msra.mxu0 0
    %386 = vmatprep.subr.bf16.mxu0 0
    %387 = vmatpush2.bf16.msra.mxu0 0
    %388 = vmatprep.subr.bf16.mxu0 0
    %389 = vmatpush2.bf16.msra.mxu0 0
    %390 = vmatprep.subr.bf16.mxu0 0
    %391 = vmatpush2.bf16.msra.mxu0 0
    %392 = vmatprep.subr.bf16.mxu0 0
    %393 = vmatpush2.bf16.msra.mxu0 0
    %394 = vmatprep.subr.bf16.mxu0 0
    %395 = vmatpush2.bf16.msra.mxu0 0
    %396 = vmatprep.subr.bf16.mxu0 0
    %397 = vmatpush2.bf16.msra.mxu0 0
    %398 = vmatprep.mubr.bf16.mxu0 0
    %399 = vmatmul.mubr.bf16.gmra.mxu0 %v364
    %v400 = vpop.f32.mrf.mxu0
    %v401 = vadd.f32 0.0, %v400
    %v402 = vpop.f32.mrf.mxu0
    %v403 = vpop.f32.mrf.mxu0
    %v404 = vadd.f32 0.0, %v403
    %v405 = vpop.f32.mrf.mxu0
    %406 = vdwg.mxu0
    %v408 = vsel %vm167, %v401, 0
    %v411 = vsel %vm167, %v404, 0
    %413 = vmatprep.subr.mxu0 0.0
    %414 = vmatpush1.msra.mxu0 0.0
    %415 = vmatprep.subr.mxu0 0.0
    %416 = vmatpush1.msra.mxu0 0.0
    %417 = vmatprep.subr.mxu0 0.0
    %418 = vmatpush1.msra.mxu0 0.0
    %419 = vmatprep.subr.mxu0 0.0
    %420 = vmatpush1.msra.mxu0 0.0
    %421 = vmatprep.subr.mxu0 0.0
    %422 = vmatpush1.msra.mxu0 0.0
    %423 = vmatprep.subr.mxu0 0.0
    %424 = vmatpush1.msra.mxu0 0.0
    %425 = vmatprep.subr.mxu0 0.0
    %426 = vmatpush1.msra.mxu0 0.0
    %427 = vmatprep.subr.mxu0 0.0
    %428 = vmatpush1.msra.mxu0 0.0
    %429 = vmatprep.subr.mxu0 0.0
    %430 = vmatpush1.msra.mxu0 0.0
    %431 = vmatprep.subr.mxu0 0.0
    %432 = vmatpush1.msra.mxu0 0.0
    %433 = vmatprep.subr.mxu0 0.0
    %434 = vmatpush1.msra.mxu0 0.0
    %435 = vmatprep.subr.mxu0 0.0
    %436 = vmatpush1.msra.mxu0 0.0
    %437 = vmatprep.subr.mxu0 0.0
    %438 = vmatpush1.msra.mxu0 0.0
    %439 = vmatprep.subr.mxu0 0.0
    %440 = vmatpush1.msra.mxu0 0.0
    %441 = vmatprep.subr.mxu0 0.0
    %442 = vmatpush1.msra.mxu0 0.0
    %443 = vmatprep.subr.mxu0 0.0
    %444 = vmatpush1.msra.mxu0 %v59
    %445 = vmatprep.subr.mxu0 0.0
    %446 = vmatpush2.msra.mxu0 0.0
    %447 = vmatprep.subr.mxu0 0.0
    %448 = vmatpush2.msra.mxu0 0.0
    %449 = vmatprep.subr.mxu0 0.0
    %450 = vmatpush2.msra.mxu0 0.0
    %451 = vmatprep.subr.mxu0 0.0
    %452 = vmatpush2.msra.mxu0 0.0
    %453 = vmatprep.subr.mxu0 0.0
    %454 = vmatpush2.msra.mxu0 0.0
    %455 = vmatprep.subr.mxu0 0.0
    %456 = vmatpush2.msra.mxu0 0.0
    %457 = vmatprep.subr.mxu0 0.0
    %458 = vmatpush2.msra.mxu0 0.0
    %459 = vmatprep.subr.mxu0 0.0
    %460 = vmatpush2.msra.mxu0 0.0
    %461 = vmatprep.subr.mxu0 0.0
    %462 = vmatpush2.msra.mxu0 0.0
    %463 = vmatprep.subr.mxu0 0.0
    %464 = vmatpush2.msra.mxu0 0.0
    %465 = vmatprep.subr.mxu0 0.0
    %466 = vmatpush2.msra.mxu0 0.0
    %467 = vmatprep.subr.mxu0 0.0
    %468 = vmatpush2.msra.mxu0 0.0
    %469 = vmatprep.subr.mxu0 0.0
    %470 = vmatpush2.msra.mxu0 0.0
    %471 = vmatprep.subr.mxu0 0.0
    %472 = vmatpush2.msra.mxu0 0.0
    %473 = vmatprep.subr.mxu0 0.0
    %474 = vmatpush2.msra.mxu0 0.0
    %475 = vmatprep.subr.mxu0 0.0
    %476 = vmatpush2.msra.mxu0 0.0
    %477 = vmatprep.mubr.f32.mxu0 0.0
    %478 = vmatmul.mubr.f32.gmra.mxu0 %v408
    %v479 = vpop.f32.mrf.mxu0
    %v480 = vadd.f32 0.0, %v479
    %v481 = vpop.f32.mrf.mxu0
    %482 = vmatprep.mubr.f32.mxu0 0.0
    %483 = vmatmul.mubr.f32.gmra.mxu0 %v411
    %v484 = vpop.f32.mrf.mxu0
    %v485 = vadd.f32 0.0, %v484
    %v486 = vpop.f32.mrf.mxu0
    %487 = vdwg.mxu0
    %v489 = vsel %vm167, %v280, 0
    %v492 = vsel %vm167, %v283, 0
    %494 = vmatprep.subr.mxu0 0.0
    %495 = vmatpush1.msra.mxu0 0.0
    %496 = vmatprep.subr.mxu0 0.0
    %497 = vmatpush1.msra.mxu0 0.0
    %498 = vmatprep.subr.mxu0 0.0
    %499 = vmatpush1.msra.mxu0 0.0
    %500 = vmatprep.subr.mxu0 0.0
    %501 = vmatpush1.msra.mxu0 0.0
    %502 = vmatprep.subr.mxu0 0.0
    %503 = vmatpush1.msra.mxu0 0.0
    %504 = vmatprep.subr.mxu0 0.0
    %505 = vmatpush1.msra.mxu0 0.0
    %506 = vmatprep.subr.mxu0 0.0
    %507 = vmatpush1.msra.mxu0 0.0
    %508 = vmatprep.subr.mxu0 0.0
    %509 = vmatpush1.msra.mxu0 0.0
    %510 = vmatprep.subr.mxu0 0.0
    %511 = vmatpush1.msra.mxu0 0.0
    %512 = vmatprep.subr.mxu0 0.0
    %513 = vmatpush1.msra.mxu0 0.0
    %514 = vmatprep.subr.mxu0 0.0
    %515 = vmatpush1.msra.mxu0 0.0
    %516 = vmatprep.subr.mxu0 0.0
    %517 = vmatpush1.msra.mxu0 0.0
    %518 = vmatprep.subr.mxu0 0.0
    %519 = vmatpush1.msra.mxu0 0.0
    %520 = vmatprep.subr.mxu0 0.0
    %521 = vmatpush1.msra.mxu0 0.0
    %522 = vmatprep.subr.mxu0 0.0
    %523 = vmatpush1.msra.mxu0 0.0
    %524 = vmatprep.subr.mxu0 0.0
    %525 = vmatpush1.msra.mxu0 %v58
    %526 = vmatprep.subr.mxu0 0.0
    %527 = vmatpush2.msra.mxu0 0.0
    %528 = vmatprep.subr.mxu0 0.0
    %529 = vmatpush2.msra.mxu0 0.0
    %530 = vmatprep.subr.mxu0 0.0
    %531 = vmatpush2.msra.mxu0 0.0
    %532 = vmatprep.subr.mxu0 0.0
    %533 = vmatpush2.msra.mxu0 0.0
    %534 = vmatprep.subr.mxu0 0.0
    %535 = vmatpush2.msra.mxu0 0.0
    %536 = vmatprep.subr.mxu0 0.0
    %537 = vmatpush2.msra.mxu0 0.0
    %538 = vmatprep.subr.mxu0 0.0
    %539 = vmatpush2.msra.mxu0 0.0
    %540 = vmatprep.subr.mxu0 0.0
    %541 = vmatpush2.msra.mxu0 0.0
    %542 = vmatprep.subr.mxu0 0.0
    %543 = vmatpush2.msra.mxu0 0.0
    %544 = vmatprep.subr.mxu0 0.0
    %545 = vmatpush2.msra.mxu0 0.0
    %546 = vmatprep.subr.mxu0 0.0
    %547 = vmatpush2.msra.mxu0 0.0
    %548 = vmatprep.subr.mxu0 0.0
    %549 = vmatpush2.msra.mxu0 0.0
    %550 = vmatprep.subr.mxu0 0.0
    %551 = vmatpush2.msra.mxu0 0.0
    %552 = vmatprep.subr.mxu0 0.0
    %553 = vmatpush2.msra.mxu0 0.0
    %554 = vmatprep.subr.mxu0 0.0
    %555 = vmatpush2.msra.mxu0 0.0
    %556 = vmatprep.subr.mxu0 0.0
    %557 = vmatpush2.msra.mxu0 0.0
    %558 = vmatprep.mubr.f32.mxu0 0.0
    %559 = vmatmul.mubr.f32.gmra.mxu0 %v489
    %v560 = vpop.f32.mrf.mxu0
    %v561 = vadd.f32 %v480, %v560
    %v562 = vpop.f32.mrf.mxu0
    %563 = vmatprep.mubr.f32.mxu0 0.0
    %564 = vmatmul.mubr.f32.gmra.mxu0 %v492
    %v565 = vpop.f32.mrf.mxu0
    %v566 = vadd.f32 %v485, %v565
    %v567 = vpop.f32.mrf.mxu0
    %568 = vdwg.mxu0
    %569 = vrot.lane.b32.xlu0 %v163, 112
    %v570 = vpop.permute.xlu0 %569
    %571 = vrot.lane.b32.xlu0 %v163, 80
    %v572 = vpop.permute.xlu0 %571
    %v574 = vsel %vm167, %v570, 0
    %v577 = vsel %vm167, %v572, 0
    %579 = vmatprep.subr.bf16.mxu0 0
    %580 = vmatpush1.bf16.xpose.msra.mxu0 0
    %581 = vmatprep.subr.bf16.mxu0 0
    %582 = vmatpush1.bf16.xpose.msra.mxu0 0
    %583 = vmatprep.subr.bf16.mxu0 0
    %584 = vmatpush1.bf16.xpose.msra.mxu0 0
    %585 = vmatprep.subr.bf16.mxu0 0
    %586 = vmatpush1.bf16.xpose.msra.mxu0 0
    %587 = vmatprep.subr.bf16.mxu0 0
    %588 = vmatpush1.bf16.xpose.msra.mxu0 0
    %589 = vmatprep.subr.bf16.mxu0 0
    %590 = vmatpush1.bf16.xpose.msra.mxu0 0
    %591 = vmatprep.subr.bf16.mxu0 0
    %592 = vmatpush1.bf16.xpose.msra.mxu0 0
    %593 = vmatprep.subr.bf16.mxu0 0
    %594 = vmatpush1.bf16.xpose.msra.mxu0 %v577
    %595 = vmatprep.subr.bf16.mxu0 0
    %596 = vmatpush2.bf16.xpose.msra.mxu0 0
    %597 = vmatprep.subr.bf16.mxu0 0
    %598 = vmatpush2.bf16.xpose.msra.mxu0 0
    %599 = vmatprep.subr.bf16.mxu0 0
    %600 = vmatpush2.bf16.xpose.msra.mxu0 0
    %601 = vmatprep.subr.bf16.mxu0 0
    %602 = vmatpush2.bf16.xpose.msra.mxu0 0
    %603 = vmatprep.subr.bf16.mxu0 0
    %604 = vmatpush2.bf16.xpose.msra.mxu0 0
    %605 = vmatprep.subr.bf16.mxu0 0
    %606 = vmatpush2.bf16.xpose.msra.mxu0 0
    %607 = vmatprep.subr.bf16.mxu0 0
    %608 = vmatpush2.bf16.xpose.msra.mxu0 0
    %609 = vmatprep.subr.bf16.mxu0 0
    %610 = vmatpush2.bf16.xpose.msra.mxu0 0
    %611 = vmatprep.mubr.bf16.mxu0 0
    %612 = vmatmul.mubr.bf16.gmra.mxu0 %v574
    %v613 = vpop.f32.mrf.mxu0
    %v614 = vadd.f32 %v56, %v613
    %v615 = vpop.f32.mrf.mxu0
    %v616 = vpop.f32.mrf.mxu0
    %v617 = vadd.f32 %v57, %v616
    %v618 = vpop.f32.mrf.mxu0
    %619 = vdwg.mxu0
    %v620 = vsel %vm215, %v614, -inf
    %621 = vmax.xlane.f32.xlu0 %v620
    %v622 = vpop.xlane.xlu0 %621
    %v623 = vsel %vm215, %v617, -inf
    %624 = vmax.xlane.f32.xlu0 %v623
    %v625 = vpop.xlane.xlu0 %624
    %v626 = vsub.f32 %v614, %v622
    %v627 = vsub.f32 %v617, %v625
    %v628 = vmul.f32 %v626, 1.442695
    %v629 = vpow.pop %v628
    %v630 = vmul.f32 %v627, 1.442695
    %v631 = vpow.pop %v630
    %v632 = vsel %vm215, %v629, 0.0
    %633 = vadd.xlane.f32.xlu0 %v632
    %v634 = vpop.xlane.xlu0 %633
    %v635 = vsel %vm215, %v631, 0.0
    %636 = vadd.xlane.f32.xlu0 %v635
    %v637 = vpop.xlane.xlu0 %636
    %v638 = vrcp.pop %v634
    %v639 = vrcp.pop %v637
    %v640 = vmul.f32 %v629, %v638
    %v641 = vmul.f32 %v631, %v639
    %v642 = vpack.c.bf16 %v641, %v640
    %643 = vrot.lane.b32.xlu0 %v163, 48
    %v644 = vpop.permute.xlu0 %643
    %v647 = vsel %vm215, %v642, 0
    %649 = vmatprep.subr.bf16.mxu0 0
    %650 = vmatpush1.bf16.msra.mxu0 0
    %651 = vmatprep.subr.bf16.mxu0 0
    %652 = vmatpush1.bf16.msra.mxu0 0
    %653 = vmatprep.subr.bf16.mxu0 0
    %654 = vmatpush1.bf16.msra.mxu0 0
    %655 = vmatprep.subr.bf16.mxu0 0
    %656 = vmatpush1.bf16.msra.mxu0 0
    %657 = vmatprep.subr.bf16.mxu0 0
    %658 = vmatpush1.bf16.msra.mxu0 0
    %659 = vmatprep.subr.bf16.mxu0 0
    %660 = vmatpush1.bf16.msra.mxu0 0
    %661 = vmatprep.subr.bf16.mxu0 0
    %662 = vmatpush1.bf16.msra.mxu0 0
    %663 = vmatprep.subr.bf16.mxu0 0
    %664 = vmatpush1.bf16.msra.mxu0 %v644
    %665 = vmatprep.subr.bf16.mxu0 0
    %666 = vmatpush2.bf16.msra.mxu0 0
    %667 = vmatprep.subr.bf16.mxu0 0
    %668 = vmatpush2.bf16.msra.mxu0 0
    %669 = vmatprep.subr.bf16.mxu0 0
    %670 = vmatpush2.bf16.msra.mxu0 0
    %671 = vmatprep.subr.bf16.mxu0 0
    %672 = vmatpush2.bf16.msra.mxu0 0
    %673 = vmatprep.subr.bf16.mxu0 0
    %674 = vmatpush2.bf16.msra.mxu0 0
    %675 = vmatprep.subr.bf16.mxu0 0
    %676 = vmatpush2.bf16.msra.mxu0 0
    %677 = vmatprep.subr.bf16.mxu0 0
    %678 = vmatpush2.bf16.msra.mxu0 0
    %679 = vmatprep.subr.bf16.mxu0 0
    %680 = vmatpush2.bf16.msra.mxu0 0
    %681 = vmatprep.mubr.bf16.mxu0 0
    %682 = vmatmul.mubr.bf16.gmra.mxu0 %v647
    %v683 = vpop.f32.mrf.mxu0
    %v684 = vadd.f32 0.0, %v683
    %v685 = vpop.f32.mrf.mxu0
    %v686 = vpop.f32.mrf.mxu0
    %v687 = vadd.f32 0.0, %v686
    %v688 = vpop.f32.mrf.mxu0
    %689 = vdwg.mxu0
    %v691 = vsel %vm167, %v684, 0
    %v694 = vsel %vm167, %v687, 0
    %696 = vmatprep.subr.mxu0 0.0
    %697 = vmatpush1.msra.mxu0 0.0
    %698 = vmatprep.subr.mxu0 0.0
    %699 = vmatpush1.msra.mxu0 0.0
    %700 = vmatprep.subr.mxu0 0.0
    %701 = vmatpush1.msra.mxu0 0.0
    %702 = vmatprep.subr.mxu0 0.0
    %703 = vmatpush1.msra.mxu0 0.0
    %704 = vmatprep.subr.mxu0 0.0
    %705 = vmatpush1.msra.mxu0 0.0
    %706 = vmatprep.subr.mxu0 0.0
    %707 = vmatpush1.msra.mxu0 0.0
    %708 = vmatprep.subr.mxu0 0.0
    %709 = vmatpush1.msra.mxu0 0.0
    %710 = vmatprep.subr.mxu0 0.0
    %711 = vmatpush1.msra.mxu0 0.0
    %712 = vmatprep.subr.mxu0 0.0
    %713 = vmatpush1.msra.mxu0 0.0
    %714 = vmatprep.subr.mxu0 0.0
    %715 = vmatpush1.msra.mxu0 0.0
    %716 = vmatprep.subr.mxu0 0.0
    %717 = vmatpush1.msra.mxu0 0.0
    %718 = vmatprep.subr.mxu0 0.0
    %719 = vmatpush1.msra.mxu0 0.0
    %720 = vmatprep.subr.mxu0 0.0
    %721 = vmatpush1.msra.mxu0 0.0
    %722 = vmatprep.subr.mxu0 0.0
    %723 = vmatpush1.msra.mxu0 0.0
    %724 = vmatprep.subr.mxu0 0.0
    %725 = vmatpush1.msra.mxu0 0.0
    %726 = vmatprep.subr.mxu0 0.0
    %727 = vmatpush1.msra.mxu0 %v60
    %728 = vmatprep.subr.mxu0 0.0
    %729 = vmatpush2.msra.mxu0 0.0
    %730 = vmatprep.subr.mxu0 0.0
    %731 = vmatpush2.msra.mxu0 0.0
    %732 = vmatprep.subr.mxu0 0.0
    %733 = vmatpush2.msra.mxu0 0.0
    %734 = vmatprep.subr.mxu0 0.0
    %735 = vmatpush2.msra.mxu0 0.0
    %736 = vmatprep.subr.mxu0 0.0
    %737 = vmatpush2.msra.mxu0 0.0
    %738 = vmatprep.subr.mxu0 0.0
    %739 = vmatpush2.msra.mxu0 0.0
    %740 = vmatprep.subr.mxu0 0.0
    %741 = vmatpush2.msra.mxu0 0.0
    %742 = vmatprep.subr.mxu0 0.0
    %743 = vmatpush2.msra.mxu0 0.0
    %744 = vmatprep.subr.mxu0 0.0
    %745 = vmatpush2.msra.mxu0 0.0
    %746 = vmatprep.subr.mxu0 0.0
    %747 = vmatpush2.msra.mxu0 0.0
    %748 = vmatprep.subr.mxu0 0.0
    %749 = vmatpush2.msra.mxu0 0.0
    %750 = vmatprep.subr.mxu0 0.0
    %751 = vmatpush2.msra.mxu0 0.0
    %752 = vmatprep.subr.mxu0 0.0
    %753 = vmatpush2.msra.mxu0 0.0
    %754 = vmatprep.subr.mxu0 0.0
    %755 = vmatpush2.msra.mxu0 0.0
    %756 = vmatprep.subr.mxu0 0.0
    %757 = vmatpush2.msra.mxu0 0.0
    %758 = vmatprep.subr.mxu0 0.0
    %759 = vmatpush2.msra.mxu0 0.0
    %760 = vmatprep.mubr.f32.mxu0 0.0
    %761 = vmatmul.mubr.f32.gmra.mxu0 %v691
    %v762 = vpop.f32.mrf.mxu0
    %v763 = vadd.f32 0.0, %v762
    %v764 = vpop.f32.mrf.mxu0
    %765 = vmatprep.mubr.f32.mxu0 0.0
    %766 = vmatmul.mubr.f32.gmra.mxu0 %v694
    %v767 = vpop.f32.mrf.mxu0
    %v768 = vadd.f32 0.0, %v767
    %v769 = vpop.f32.mrf.mxu0
    %770 = vdwg.mxu0
    %v771 = vadd.f32 %v561, %v763
    %v772 = vadd.f32 %v566, %v768
    %773 = vrot.lane.b32.xlu0 %v163, 104
    %v774 = vpop.permute.xlu0 %773
    %775 = vrot.lane.b32.xlu0 %v163, 72
    %v776 = vpop.permute.xlu0 %775
    %v778 = vsel %vm167, %v774, 0
    %v781 = vsel %vm167, %v776, 0
    %783 = vmatprep.subr.bf16.mxu0 0
    %784 = vmatpush1.bf16.xpose.msra.mxu0 0
    %785 = vmatprep.subr.bf16.mxu0 0
    %786 = vmatpush1.bf16.xpose.msra.mxu0 0
    %787 = vmatprep.subr.bf16.mxu0 0
    %788 = vmatpush1.bf16.xpose.msra.mxu0 0
    %789 = vmatprep.subr.bf16.mxu0 0
    %790 = vmatpush1.bf16.xpose.msra.mxu0 0
    %791 = vmatprep.subr.bf16.mxu0 0
    %792 = vmatpush1.bf16.xpose.msra.mxu0 0
    %793 = vmatprep.subr.bf16.mxu0 0
    %794 = vmatpush1.bf16.xpose.msra.mxu0 0
    %795 = vmatprep.subr.bf16.mxu0 0
    %796 = vmatpush1.bf16.xpose.msra.mxu0 0
    %797 = vmatprep.subr.bf16.mxu0 0
    %798 = vmatpush1.bf16.xpose.msra.mxu0 %v781
    %799 = vmatprep.subr.bf16.mxu0 0
    %800 = vmatpush2.bf16.xpose.msra.mxu0 0
    %801 = vmatprep.subr.bf16.mxu0 0
    %802 = vmatpush2.bf16.xpose.msra.mxu0 0
    %803 = vmatprep.subr.bf16.mxu0 0
    %804 = vmatpush2.bf16.xpose.msra.mxu0 0
    %805 = vmatprep.subr.bf16.mxu0 0
    %806 = vmatpush2.bf16.xpose.msra.mxu0 0
    %807 = vmatprep.subr.bf16.mxu0 0
    %808 = vmatpush2.bf16.xpose.msra.mxu0 0
    %809 = vmatprep.subr.bf16.mxu0 0
    %810 = vmatpush2.bf16.xpose.msra.mxu0 0
    %811 = vmatprep.subr.bf16.mxu0 0
    %812 = vmatpush2.bf16.xpose.msra.mxu0 0
    %813 = vmatprep.subr.bf16.mxu0 0
    %814 = vmatpush2.bf16.xpose.msra.mxu0 0
    %815 = vmatprep.mubr.bf16.mxu0 0
    %816 = vmatmul.mubr.bf16.gmra.mxu0 %v778
    %v817 = vpop.f32.mrf.mxu0
    %v818 = vadd.f32 %v56, %v817
    %v819 = vpop.f32.mrf.mxu0
    %v820 = vpop.f32.mrf.mxu0
    %v821 = vadd.f32 %v57, %v820
    %v822 = vpop.f32.mrf.mxu0
    %823 = vdwg.mxu0
    %v824 = vsel %vm215, %v818, -inf
    %825 = vmax.xlane.f32.xlu0 %v824
    %v826 = vpop.xlane.xlu0 %825
    %v827 = vsel %vm215, %v821, -inf
    %828 = vmax.xlane.f32.xlu0 %v827
    %v829 = vpop.xlane.xlu0 %828
    %v830 = vsub.f32 %v818, %v826
    %v831 = vsub.f32 %v821, %v829
    %v832 = vmul.f32 %v830, 1.442695
    %v833 = vpow.pop %v832
    %v834 = vmul.f32 %v831, 1.442695
    %v835 = vpow.pop %v834
    %v836 = vsel %vm215, %v833, 0.0
    %837 = vadd.xlane.f32.xlu0 %v836
    %v838 = vpop.xlane.xlu0 %837
    %v839 = vsel %vm215, %v835, 0.0
    %840 = vadd.xlane.f32.xlu0 %v839
    %v841 = vpop.xlane.xlu0 %840
    %v842 = vrcp.pop %v838
    %v843 = vrcp.pop %v841
    %v844 = vmul.f32 %v833, %v842
    %v845 = vmul.f32 %v835, %v843
    %v846 = vpack.c.bf16 %v845, %v844
    %847 = vrot.lane.b32.xlu0 %v163, 40
    %v848 = vpop.permute.xlu0 %847
    %v851 = vsel %vm215, %v846, 0
    %853 = vmatprep.subr.bf16.mxu0 0
    %854 = vmatpush1.bf16.msra.mxu0 0
    %855 = vmatprep.subr.bf16.mxu0 0
    %856 = vmatpush1.bf16.msra.mxu0 0
    %857 = vmatprep.subr.bf16.mxu0 0
    %858 = vmatpush1.bf16.msra.mxu0 0
    %859 = vmatprep.subr.bf16.mxu0 0
    %860 = vmatpush1.bf16.msra.mxu0 0
    %861 = vmatprep.subr.bf16.mxu0 0
    %862 = vmatpush1.bf16.msra.mxu0 0
    %863 = vmatprep.subr.bf16.mxu0 0
    %864 = vmatpush1.bf16.msra.mxu0 0
    %865 = vmatprep.subr.bf16.mxu0 0
    %866 = vmatpush1.bf16.msra.mxu0 0
    %867 = vmatprep.subr.bf16.mxu0 0
    %868 = vmatpush1.bf16.msra.mxu0 %v848
    %869 = vmatprep.subr.bf16.mxu0 0
    %870 = vmatpush2.bf16.msra.mxu0 0
    %871 = vmatprep.subr.bf16.mxu0 0
    %872 = vmatpush2.bf16.msra.mxu0 0
    %873 = vmatprep.subr.bf16.mxu0 0
    %874 = vmatpush2.bf16.msra.mxu0 0
    %875 = vmatprep.subr.bf16.mxu0 0
    %876 = vmatpush2.bf16.msra.mxu0 0
    %877 = vmatprep.subr.bf16.mxu0 0
    %878 = vmatpush2.bf16.msra.mxu0 0
    %879 = vmatprep.subr.bf16.mxu0 0
    %880 = vmatpush2.bf16.msra.mxu0 0
    %881 = vmatprep.subr.bf16.mxu0 0
    %882 = vmatpush2.bf16.msra.mxu0 0
    %883 = vmatprep.subr.bf16.mxu0 0
    %884 = vmatpush2.bf16.msra.mxu0 0
    %885 = vmatprep.mubr.bf16.mxu0 0
    %886 = vmatmul.mubr.bf16.gmra.mxu0 %v851
    %v887 = vpop.f32.mrf.mxu0
    %v888 = vadd.f32 0.0, %v887
    %v889 = vpop.f32.mrf.mxu0
    %v890 = vpop.f32.mrf.mxu0
    %v891 = vadd.f32 0.0, %v890
    %v892 = vpop.f32.mrf.mxu0
    %893 = vdwg.mxu0
    %v895 = vsel %vm167, %v888, 0
    %v898 = vsel %vm167, %v891, 0
    %900 = vmatprep.subr.mxu0 0.0
    %901 = vmatpush1.msra.mxu0 0.0
    %902 = vmatprep.subr.mxu0 0.0
    %903 = vmatpush1.msra.mxu0 0.0
    %904 = vmatprep.subr.mxu0 0.0
    %905 = vmatpush1.msra.mxu0 0.0
    %906 = vmatprep.subr.mxu0 0.0
    %907 = vmatpush1.msra.mxu0 0.0
    %908 = vmatprep.subr.mxu0 0.0
    %909 = vmatpush1.msra.mxu0 0.0
    %910 = vmatprep.subr.mxu0 0.0
    %911 = vmatpush1.msra.mxu0 0.0
    %912 = vmatprep.subr.mxu0 0.0
    %913 = vmatpush1.msra.mxu0 0.0
    %914 = vmatprep.subr.mxu0 0.0
    %915 = vmatpush1.msra.mxu0 0.0
    %916 = vmatprep.subr.mxu0 0.0
    %917 = vmatpush1.msra.mxu0 0.0
    %918 = vmatprep.subr.mxu0 0.0
    %919 = vmatpush1.msra.mxu0 0.0
    %920 = vmatprep.subr.mxu0 0.0
    %921 = vmatpush1.msra.mxu0 0.0
    %922 = vmatprep.subr.mxu0 0.0
    %923 = vmatpush1.msra.mxu0 0.0
    %924 = vmatprep.subr.mxu0 0.0
    %925 = vmatpush1.msra.mxu0 0.0
    %926 = vmatprep.subr.mxu0 0.0
    %927 = vmatpush1.msra.mxu0 0.0
    %928 = vmatprep.subr.mxu0 0.0
    %929 = vmatpush1.msra.mxu0 0.0
    %930 = vmatprep.subr.mxu0 0.0
    %931 = vmatpush1.msra.mxu0 %v61
    %932 = vmatprep.subr.mxu0 0.0
    %933 = vmatpush2.msra.mxu0 0.0
    %934 = vmatprep.subr.mxu0 0.0
    %935 = vmatpush2.msra.mxu0 0.0
    %936 = vmatprep.subr.mxu0 0.0
    %937 = vmatpush2.msra.mxu0 0.0
    %938 = vmatprep.subr.mxu0 0.0
    %939 = vmatpush2.msra.mxu0 0.0
    %940 = vmatprep.subr.mxu0 0.0
    %941 = vmatpush2.msra.mxu0 0.0
    %942 = vmatprep.subr.mxu0 0.0
    %943 = vmatpush2.msra.mxu0 0.0
    %944 = vmatprep.subr.mxu0 0.0
    %945 = vmatpush2.msra.mxu0 0.0
    %946 = vmatprep.subr.mxu0 0.0
    %947 = vmatpush2.msra.mxu0 0.0
    %948 = vmatprep.subr.mxu0 0.0
    %949 = vmatpush2.msra.mxu0 0.0
    %950 = vmatprep.subr.mxu0 0.0
    %951 = vmatpush2.msra.mxu0 0.0
    %952 = vmatprep.subr.mxu0 0.0
    %953 = vmatpush2.msra.mxu0 0.0
    %954 = vmatprep.subr.mxu0 0.0
    %955 = vmatpush2.msra.mxu0 0.0
    %956 = vmatprep.subr.mxu0 0.0
    %957 = vmatpush2.msra.mxu0 0.0
    %958 = vmatprep.subr.mxu0 0.0
    %959 = vmatpush2.msra.mxu0 0.0
    %960 = vmatprep.subr.mxu0 0.0
    %961 = vmatpush2.msra.mxu0 0.0
    %962 = vmatprep.subr.mxu0 0.0
    %963 = vmatpush2.msra.mxu0 0.0
    %964 = vmatprep.mubr.f32.mxu0 0.0
    %965 = vmatmul.mubr.f32.gmra.mxu0 %v895
    %v966 = vpop.f32.mrf.mxu0
    %v967 = vadd.f32 0.0, %v966
    %v968 = vpop.f32.mrf.mxu0
    %969 = vmatprep.mubr.f32.mxu0 0.0
    %970 = vmatmul.mubr.f32.gmra.mxu0 %v898
    %v971 = vpop.f32.mrf.mxu0
    %v972 = vadd.f32 0.0, %v971
    %v973 = vpop.f32.mrf.mxu0
    %974 = vdwg.mxu0
    %v975 = vadd.f32 %v771, %v967
    %v976 = vadd.f32 %v772, %v972
    %v977 = vadd.f32 %v33, %v975
    %v978 = vadd.f32 %v34, %v976
    %v979 = vlaneseq
    %v980 = vshrl.u32 %v979, 7
    %v981 = vsub.s32 3, %v980
    %v982 = vrot.slane %v55, %v981
    %v983 = vadd.f32 %v977, %v982
    %v984 = vadd.f32 %v978, %v982
    %v985 = vsel %vm62, %v983, 0.0
    %986 = vadd.xlane.f32.xlu0 %v985
    %v987 = vpop.xlane.xlu0 %986
    %v988 = vsel %vm62, %v984, 0.0
    %989 = vadd.xlane.f32.xlu0 %v988
    %v990 = vpop.xlane.xlu0 %989
    %v991 = vmul.f32 %v987, %v69
    %v992 = vmul.f32 %v990, %v69
    %v993 = vsub.f32 %v983, %v991
    %v994 = vsub.f32 %v984, %v992
    %v995 = vmul.f32 %v993, %v993
    %v996 = vmul.f32 %v994, %v994
    %v997 = vsel %vm62, %v995, 0.0
    %998 = vadd.xlane.f32.xlu0 %v997
    %v999 = vpop.xlane.xlu0 %998
    %v1000 = vsel %vm62, %v996, 0.0
    %1001 = vadd.xlane.f32.xlu0 %v1000
    %v1002 = vpop.xlane.xlu0 %1001
    %v1003 = vmul.f32 %v999, %v69
    %v1004 = vmul.f32 %v1002, %v69
    %v1005 = vadd.f32 %v1003, 1e-05
    %v1006 = vadd.f32 %v1004, 1e-05
    %v1007 = vrsqrt.pop %v1005
    %v1008 = vrsqrt.pop %v1006
    %v1009 = vmul.f32 %v993, %v1007
    %v1010 = vmul.f32 %v994, %v1008
    %v1011 = vlaneseq
    %v1012 = vshrl.u32 %v1011, 7
    %v1013 = vsub.s32 4, %v1012
    %v1014 = vrot.slane %v55, %v1013
    %v1015 = vmul.f32 %v1009, %v1014
    %v1016 = vmul.f32 %v1010, %v1014
    %v1017 = vlaneseq
    %v1018 = vshrl.u32 %v1017, 7
    %v1019 = vsub.s32 5, %v1018
    %v1020 = vrot.slane %v55, %v1019
    %v1021 = vadd.f32 %v1015, %v1020
    %v1022 = vadd.f32 %v1016, %v1020
    %v1023 = vpack.c.bf16 %v1022, %v1021
    %v1024 = vlaneseq
    %v1025 = vshrl.u32 %v1024, 7
    %v1026 = vsub.s32 6, %v1025
    %v1027 = vrot.slane %v55, %v1026
    %v1028 = vunpack.c.h.b16 %v35
    %v1029 = vunpack.c.h.b16 %v36
    %v1030 = vunpack.c.h.b16 %v37
    %v1031 = vunpack.c.h.b16 %v38
    %v1032 = vpack.c.b16 %v1029, %v1028
    %v1033 = vpack.c.b16 %v1031, %v1030
    %v1037 = vsel %vm62, %v1023, 0
    %1039 = vmatprep.subr.bf16.mxu0 0
    %1040 = vmatpush1.bf16.msra.mxu0 0
    %1041 = vmatprep.subr.bf16.mxu0 0
    %1042 = vmatpush1.bf16.msra.mxu0 0
    %1043 = vmatprep.subr.bf16.mxu0 0
    %1044 = vmatpush1.bf16.msra.mxu0 0
    %1045 = vmatprep.subr.bf16.mxu0 0
    %1046 = vmatpush1.bf16.msra.mxu0 0
    %1047 = vmatprep.subr.bf16.mxu0 0
    %1048 = vmatpush1.bf16.msra.mxu0 0
    %1049 = vmatprep.subr.bf16.mxu0 0
    %1050 = vmatpush1.bf16.msra.mxu0 0
    %1051 = vmatprep.subr.bf16.mxu0 0
    %1052 = vmatpush1.bf16.msra.mxu0 %v1033
    %1053 = vmatprep.subr.bf16.mxu0 0
    %1054 = vmatpush1.bf16.msra.mxu0 %v1032
    %1055 = vmatprep.subr.bf16.mxu0 0
    %1056 = vmatpush2.bf16.msra.mxu0 0
    %1057 = vmatprep.subr.bf16.mxu0 0
    %1058 = vmatpush2.bf16.msra.mxu0 0
    %1059 = vmatprep.subr.bf16.mxu0 0
    %1060 = vmatpush2.bf16.msra.mxu0 0
    %1061 = vmatprep.subr.bf16.mxu0 0
    %1062 = vmatpush2.bf16.msra.mxu0 0
    %1063 = vmatprep.subr.bf16.mxu0 0
    %1064 = vmatpush2.bf16.msra.mxu0 0
    %1065 = vmatprep.subr.bf16.mxu0 0
    %1066 = vmatpush2.bf16.msra.mxu0 0
    %1067 = vmatprep.subr.bf16.mxu0 0
    %1068 = vmatpush2.bf16.msra.mxu0 0
    %1069 = vmatprep.subr.bf16.mxu0 0
    %1070 = vmatpush2.bf16.msra.mxu0 0
    %1071 = vmatprep.mubr.bf16.mxu0 0
    %1072 = vmatmul.mubr.bf16.gmra.mxu0 %v1037
    %v1073 = vpop.f32.mrf.mxu0
    %v1074 = vadd.f32 %v1027, %v1073
    %v1075 = vpop.f32.mrf.mxu0
    %v1076 = vpop.f32.mrf.mxu0
    %v1077 = vadd.f32 %v1027, %v1076
    %v1078 = vpop.f32.mrf.mxu0
    %1079 = vdwg.mxu0
    %v1080 = vmul.f32 %v1074, 0.5
    %v1081 = vmul.f32 %v1077, 0.5
    %v1082 = vmul.f32 %v1074, 0.044715
    %v1083 = vmul.f32 %v1077, 0.044715
    %v1084 = vmul.f32 %v1082, %v1074
    %v1085 = vmul.f32 %v1083, %v1077
    %v1086 = vmul.f32 %v1084, %v1074
    %v1087 = vmul.f32 %v1085, %v1077
    %v1088 = vadd.f32 %v1074, %v1086
    %v1089 = vadd.f32 %v1077, %v1087
    %v1090 = vmul.f32 %v1088, 0.7978846
    %v1091 = vmul.f32 %v1089, 0.7978846
    %v1092 = vtanh.pop %v1090
    %v1093 = vtanh.pop %v1091
    %v1094 = vadd.f32 %v1092, 1.0
    %v1095 = vadd.f32 %v1093, 1.0
    %v1096 = vmul.f32 %v1080, %v1094
    %v1097 = vmul.f32 %v1081, %v1095
    %v1098 = vpack.c.bf16 %v1097, %v1096
    %v1099 = vlaneseq
    %v1100 = vshrl.u32 %v1099, 7
    %v1101 = vsub.s32 7, %v1100
    %v1102 = vrot.slane %v55, %v1101
    %v1119 = vunpack.c.l.b16 %v39
    %v1120 = vunpack.c.l.b16 %v40
    %v1121 = vunpack.c.l.b16 %v41
    %v1122 = vunpack.c.l.b16 %v42
    %v1123 = vunpack.c.l.b16 %v43
    %v1124 = vunpack.c.l.b16 %v44
    %v1125 = vunpack.c.l.b16 %v45
    %v1126 = vunpack.c.l.b16 %v46
    %v1127 = vunpack.c.l.b16 %v47
    %v1128 = vunpack.c.l.b16 %v48
    %v1129 = vunpack.c.l.b16 %v49
    %v1130 = vunpack.c.l.b16 %v50
    %v1131 = vunpack.c.l.b16 %v51
    %v1132 = vunpack.c.l.b16 %v52
    %v1133 = vunpack.c.l.b16 %v53
    %v1134 = vunpack.c.l.b16 %v54
    %v1135 = vpack.c.b16 %v1120, %v1119
    %v1136 = vpack.c.b16 %v1122, %v1121
    %v1137 = vpack.c.b16 %v1124, %v1123
    %v1138 = vpack.c.b16 %v1126, %v1125
    %v1139 = vpack.c.b16 %v1128, %v1127
    %v1140 = vpack.c.b16 %v1130, %v1129
    %v1141 = vpack.c.b16 %v1132, %v1131
    %v1142 = vpack.c.b16 %v1134, %v1133
    %1151 = vmatprep.subr.bf16.mxu0 0
    %1152 = vmatpush1.bf16.msra.mxu0 %v1142
    %1153 = vmatprep.subr.bf16.mxu0 0
    %1154 = vmatpush1.bf16.msra.mxu0 %v1141
    %1155 = vmatprep.subr.bf16.mxu0 0
    %1156 = vmatpush1.bf16.msra.mxu0 %v1140
    %1157 = vmatprep.subr.bf16.mxu0 0
    %1158 = vmatpush1.bf16.msra.mxu0 %v1139
    %1159 = vmatprep.subr.bf16.mxu0 0
    %1160 = vmatpush1.bf16.msra.mxu0 %v1138
    %1161 = vmatprep.subr.bf16.mxu0 0
    %1162 = vmatpush1.bf16.msra.mxu0 %v1137
    %1163 = vmatprep.subr.bf16.mxu0 0
    %1164 = vmatpush1.bf16.msra.mxu0 %v1136
    %1165 = vmatprep.subr.bf16.mxu0 0
    %1166 = vmatpush1.bf16.msra.mxu0 %v1135
    %1167 = vmatprep.subr.bf16.mxu0 0
    %1168 = vmatpush2.bf16.msra.mxu0 0
    %1169 = vmatprep.subr.bf16.mxu0 0
    %1170 = vmatpush2.bf16.msra.mxu0 0
    %1171 = vmatprep.subr.bf16.mxu0 0
    %1172 = vmatpush2.bf16.msra.mxu0 0
    %1173 = vmatprep.subr.bf16.mxu0 0
    %1174 = vmatpush2.bf16.msra.mxu0 0
    %1175 = vmatprep.subr.bf16.mxu0 0
    %1176 = vmatpush2.bf16.msra.mxu0 0
    %1177 = vmatprep.subr.bf16.mxu0 0
    %1178 = vmatpush2.bf16.msra.mxu0 0
    %1179 = vmatprep.subr.bf16.mxu0 0
    %1180 = vmatpush2.bf16.msra.mxu0 0
    %1181 = vmatprep.subr.bf16.mxu0 0
    %1182 = vmatpush2.bf16.msra.mxu0 0
    %1183 = vmatprep.mubr.bf16.mxu0 0
    %1184 = vmatmul.mubr.bf16.gmra.mxu0 %v1098
    %v1185 = vpop.f32.mrf.mxu0
    %v1186 = vadd.f32 %v1102, %v1185
    %v1187 = vpop.f32.mrf.mxu0
    %v1188 = vpop.f32.mrf.mxu0
    %v1189 = vadd.f32 %v1102, %v1188
    %v1190 = vpop.f32.mrf.mxu0
    %1191 = vdwg.mxu0
    %v1192 = vadd.f32 %v983, %v1186
    %v1193 = vadd.f32 %v984, %v1189
    %1194 = vst.msk [vmem:[#allocation5] sm:$0xff] %vm62, %v1192
    %1195 = vst.msk [vmem:[#allocation5 + $0x8] sm:$0xff] %vm62, %v1193
    // Predicated region
    $region22: #{transformer_block.1} parent=1 // pred_check
      _
    $region23: #{transformer_block.1} parent=1 // pred_check_branch
      %1197 = sbr.rel (0) target = $region25
    $region24: #{transformer_block.1} parent=1 // pred_region
      %s1199 = ssub.s32 256, 256
      %1200 = vsyncadd [#allocation4], %s1199
      %s1201 = sshll.u32 [#allocation5], 4
      %s1202 = int_to_ptr.vmem [resolvable:$true] %s1201
      %1207 = dma.vmem_to_hbm [thread:$0]  %s1202, 256, %s4, [#allocation4], 128, 128, 8
    $region25: #{transformer_block.1} parent=1 // pred_fallthru
      _
    // Predicated region
    $region26: #{transformer_block.1} parent=1 // pred_check
      _
    $region27: #{transformer_block.1} parent=1 // pred_check_branch
      %1209 = sbr.rel (0) target = $region29
    $region28: #{transformer_block.1} parent=1 // pred_region
      %1210 = dma.done [#allocation4], 256
    $region29: #{transformer_block.1} parent=1 // pred_fallthru
      _
    %1211 = vsyncpa [#allocation3], 1
    %1212 = vsyncpa [#allocation4], 1

</llo_original>
